<compile_context>
chip_gen: v5e
topology: v5e:2x2
jax: 0.10.0
libtpu: 0.0.40
codegen_flags: <defaults>
</compile_context>

<pallas_src>
import math

import jax
import jax.numpy as jnp
from jax.experimental import pallas as pl
from jax.experimental.pallas import tpu as pltpu

_C1 = 0.01 ** 2
_C2 = 0.03 ** 2


def _gaussian_1d(window_size: int, sigma: float) -> jnp.ndarray:
    g = jnp.array(
        [math.exp(-((x - window_size // 2) ** 2) / float(2 * sigma ** 2))
         for x in range(window_size)],
        dtype=jnp.float32,
    )
    return g / jnp.sum(g)


def _conv_matrix(size: int, g: jnp.ndarray, pad: int) -> jnp.ndarray:
    """M[i, u] = g[u - i + pad] when in range else 0 (zero 'same' padding)."""
    k = g.shape[0]
    idx = jnp.arange(size)
    diff = idx[None, :] - idx[:, None] + pad          # [i, u] -> u - i + pad
    valid = (diff >= 0) & (diff < k)
    return jnp.where(valid, g[jnp.clip(diff, 0, k - 1)], 0.0).astype(jnp.float32)


def _ssim_kernel(img1_ref, img2_ref, mw_t_ref, mh_ref, out_ref):
    # Per grid step: one (image, channel-block).  img refs: (1, tc, H, W);
    # mw_t: (W, W); mh: (H, H) (both VMEM-resident across the whole grid).
    x1 = img1_ref[0].astype(jnp.float32)              # (tc, H, W)
    x2 = img2_ref[0].astype(jnp.float32)
    mw_t = mw_t_ref[...]
    mh = mh_ref[...]
    tc, H, W = x1.shape

    fields = (x1, x2, x1 * x1, x2 * x2, x1 * x2)

    # --- stage 1: W-direction blur (MXU, right multiply) ------------------
    if tc * H <= 512:
        # Batch all 5 fields into one matmul: fills the MXU M-dim for small
        # tc*H and pushes Mw into the weight registers only once.
        stacked = jnp.concatenate([f.reshape(tc * H, W) for f in fields], axis=0)
        y_all = jnp.dot(stacked, mw_t, preferred_element_type=jnp.float32)
        y_fields = [y_all[i * tc * H:(i + 1) * tc * H].reshape(tc, H, W)
                    for i in range(5)]
    else:
        y_fields = [jnp.dot(f.reshape(tc * H, W), mw_t,
                            preferred_element_type=jnp.float32).reshape(tc, H, W)
                    for f in fields]

    # --- stage 2: H-direction blur (MXU, transpose-free LEFT multiply) ----
    def hblur(yf):
        return jnp.stack(
            [jnp.dot(mh, yf[c], preferred_element_type=jnp.float32)
             for c in range(tc)],
            axis=0)                                    # (tc, H, W)

    mu1, mu2, e11, e22, e12 = [hblur(yf) for yf in y_fields]

    mu1_sq = mu1 * mu1
    mu2_sq = mu2 * mu2
    mu1_mu2 = mu1 * mu2
    sigma1_sq = e11 - mu1_sq
    sigma2_sq = e22 - mu2_sq
    sigma12 = e12 - mu1_mu2

    numer = (2.0 * mu1_mu2 + _C1) * (2.0 * sigma12 + _C2)
    denom = (mu1_sq + mu2_sq + _C1) * (sigma1_sq + sigma2_sq + _C2)
    # EUP approx reciprocal + one Newton step (keeps VALU slots free while
    # staying well inside the 1e-4 tolerance).
    r = pl.reciprocal(denom, approx=True)
    r = r * (2.0 - denom * r)
    ssim_map = numer * r

    # Lane-resident staged reduction: channel axis (vreg-wise VPU adds) +
    # sublane axis (H); keep the lane axis W and store a lane-dense partial.
    out_ref[...] = jnp.sum(ssim_map, axis=(0, 1)).reshape(1, 1, W)


def _vmem_capacity_bytes() -> int:
    """Generation-aware VMEM capacity (fallback: conservative v7x 64 MiB)."""
    try:
        cap = int(pltpu.get_tpu_info().vmem_capacity_bytes)
        if cap > 0:
            return cap
    except Exception:
        pass
    return 64 * 1024 * 1024


def _pick_channel_tile(C: int, H: int, W: int, budget_bytes: int):
    """Largest channel tile tc (divisor of C) whose working set fits budget."""
    img_bytes = H * W * 4                               # per channel, f32
    const_bytes = (H * H + W * W) * 4                   # resident conv matrices

    def est(tc):
        # 2 inputs x 2 pipeline buffers + ~14 image-sized live temps
        # (5 products/fields, 5 stage-1 temps, 5 blurred fields, ssim_map, ...).
        return (2 * 2 + 14) * tc * img_bytes + const_bytes

    for tc in sorted((d for d in range(1, C + 1) if C % d == 0), reverse=True):
        if est(tc) <= budget_bytes:
            return tc, est(tc)
    # TODO(synk): if even tc=1 doesn't fit (huge single-channel images), add a
    # row-block grid axis with a (window_size//2)-row halo.
    return 1, est(1)


def ssim_loss(img1: jnp.ndarray, img2: jnp.ndarray,
              window_size: int = 11, sigma: float = 1.5,
              size_average: bool = True) -> jnp.ndarray:
    assert img1.shape == img2.shape and img1.ndim == 4
    N, C, H, W = img1.shape
    pad = window_size // 2

    g = _gaussian_1d(window_size, sigma)
    mw_t = _conv_matrix(W, g, pad).T   # right operand: y = x @ mw_t
    mh = _conv_matrix(H, g, pad)       # LEFT operand:  z = mh @ y (no transpose)

    vmem_cap = _vmem_capacity_bytes()
    tc, est = _pick_channel_tile(C, H, W, int(0.75 * vmem_cap))
    ncb = C // tc
    vmem_limit = int(min(max(2 * est, 32 * 1024 * 1024), int(0.9 * vmem_cap)))

    partial = pl.pallas_call(
        _ssim_kernel,
        out_shape=jax.ShapeDtypeStruct((N, ncb, W), jnp.float32),
        grid_spec=pltpu.PrefetchScalarGridSpec(
            num_scalar_prefetch=0,
            grid=(N, ncb),
            in_specs=[
                pl.BlockSpec((1, tc, H, W), lambda n, cb: (n, cb, 0, 0)),
                pl.BlockSpec((1, tc, H, W), lambda n, cb: (n, cb, 0, 0)),
                pl.BlockSpec((W, W), lambda n, cb: (0, 0)),   # resident across grid
                pl.BlockSpec((H, H), lambda n, cb: (0, 0)),   # resident across grid
            ],
            out_specs=pl.BlockSpec((1, 1, W), lambda n, cb: (n, cb, 0)),
        ),
        compiler_params=pltpu.CompilerParams(
            dimension_semantics=("parallel", "parallel"),
            vmem_limit_bytes=vmem_limit,
        ),
    )(img1, img2, mw_t, mh)            # no wrapper-side f32 pre-cast

    if size_average:
        return 1.0 - jnp.sum(partial) / (N * C * H * W)
    # size_average=False: per-batch mean over (C, H, W), as in the reference.
    return 1.0 - jnp.sum(partial, axis=(1, 2)) / (C * H * W)


def _ssim_loss_ref(img1, img2, window_size=11, sigma=1.5):
    """Pure-JAX reference mirroring the PyTorch module (for a sanity check)."""
    N, C, H, W = img1.shape
    g = _gaussian_1d(window_size, sigma)
    w2d = jnp.outer(g, g)
    win = jnp.broadcast_to(w2d, (C, 1, window_size, window_size))
    pad = window_size // 2

    def dwconv(x):
        return jax.lax.conv_general_dilated(
            x, win, window_strides=(1, 1), padding=[(pad, pad), (pad, pad)],
            dimension_numbers=("NCHW", "OIHW", "NCHW"), feature_group_count=C)

    mu1, mu2 = dwconv(img1), dwconv(img2)
    s1 = dwconv(img1 * img1) - mu1 * mu1
    s2 = dwconv(img2 * img2) - mu2 * mu2
    s12 = dwconv(img1 * img2) - mu1 * mu2
    m = ((2 * mu1 * mu2 + _C1) * (2 * s12 + _C2)) / (
        (mu1 * mu1 + mu2 * mu2 + _C1) * (s1 + s2 + _C2))
    return 1.0 - jnp.mean(m)


if __name__ == "__main__":
    key = jax.random.PRNGKey(0)
    k1, k2 = jax.random.split(key)
    img1 = jax.random.uniform(k1, (2, 4, 16, 16), dtype=jnp.float32)
    img2 = jax.random.uniform(k2, (2, 4, 16, 16), dtype=jnp.float32)

    loss = jax.block_until_ready(ssim_loss(img1, img2))
    ref = jax.block_until_ready(_ssim_loss_ref(img1, img2))

    assert jnp.isfinite(loss), "kernel produced non-finite loss"
    assert abs(float(loss) - float(ref)) < 1e-4, (float(loss), float(ref))
    print("KERNEL_OK")
</pallas_src>

<mosaic_0001>
module attributes {stable_mosaic.version = 11 : i64} {
  func.func @_ssim_kernel(%arg0: i32, %arg1: i32, %arg2: memref<1x4x16x16xf32, #tpu.memory_space<vmem>>, %arg3: memref<1x4x16x16xf32, #tpu.memory_space<vmem>>, %arg4: memref<16x16xf32, #tpu.memory_space<vmem>>, %arg5: memref<16x16xf32, #tpu.memory_space<vmem>>, %arg6: memref<1x1x16xf32, #tpu.memory_space<vmem>>) attributes {dimension_semantics = [#tpu.dimension_semantics<parallel>, #tpu.dimension_semantics<parallel>], iteration_bounds = array<i64: 2, 1>, scalar_prefetch = 0 : i64, scratch_operands = 0 : i64, tpu.core_type = #tpu.core_type<tc>, window_params = [{transform_indices = @transform_0, window_bounds = array<i64: 1, 4, 16, 16>}, {transform_indices = @transform_1, window_bounds = array<i64: 1, 4, 16, 16>}, {pipeline_mode = #tpu.pipeline_mode<synchronous>, transform_indices = @transform_2, window_bounds = array<i64: 16, 16>}, {pipeline_mode = #tpu.pipeline_mode<synchronous>, transform_indices = @transform_3, window_bounds = array<i64: 16, 16>}, {transform_indices = @transform_4, window_bounds = array<i64: 1, 1, 16>}]} {
    %c0 = arith.constant 0 : index
    %c0_0 = arith.constant 0 : index
    %c0_1 = arith.constant 0 : index
    %c0_2 = arith.constant 0 : index
    %0 = vector.load %arg2[%c0, %c0_0, %c0_1, %c0_2] : memref<1x4x16x16xf32, #tpu.memory_space<vmem>>, vector<1x4x16x16xf32>
    %1 = vector.shape_cast %0 : vector<1x4x16x16xf32> to vector<4x16x16xf32>
    %c0_3 = arith.constant 0 : index
    %c0_4 = arith.constant 0 : index
    %c0_5 = arith.constant 0 : index
    %c0_6 = arith.constant 0 : index
    %2 = vector.load %arg3[%c0_3, %c0_4, %c0_5, %c0_6] : memref<1x4x16x16xf32, #tpu.memory_space<vmem>>, vector<1x4x16x16xf32>
    %3 = vector.shape_cast %2 : vector<1x4x16x16xf32> to vector<4x16x16xf32>
    %c0_7 = arith.constant 0 : index
    %c0_8 = arith.constant 0 : index
    %4 = vector.load %arg4[%c0_7, %c0_8] : memref<16x16xf32, #tpu.memory_space<vmem>>, vector<16x16xf32>
    %c0_9 = arith.constant 0 : index
    %c0_10 = arith.constant 0 : index
    %5 = vector.load %arg5[%c0_9, %c0_10] : memref<16x16xf32, #tpu.memory_space<vmem>>, vector<16x16xf32>
    %6 = arith.mulf %1, %1 : vector<4x16x16xf32>
    %7 = arith.mulf %3, %3 : vector<4x16x16xf32>
    %8 = arith.mulf %1, %3 : vector<4x16x16xf32>
    %9 = vector.shape_cast %1 : vector<4x16x16xf32> to vector<64x16xf32>
    %10 = vector.shape_cast %3 : vector<4x16x16xf32> to vector<64x16xf32>
    %11 = vector.shape_cast %6 : vector<4x16x16xf32> to vector<64x16xf32>
    %12 = vector.shape_cast %7 : vector<4x16x16xf32> to vector<64x16xf32>
    %13 = vector.shape_cast %8 : vector<4x16x16xf32> to vector<64x16xf32>
    %14 = tpu.concatenate %9, %10, %11, %12, %13 in 0 : vector<64x16xf32>, vector<64x16xf32>, vector<64x16xf32>, vector<64x16xf32>, vector<64x16xf32> -> vector<320x16xf32>
    %cst = arith.constant dense<0.000000e+00> : vector<320x16xf32>
    %15 = tpu.matmul %14, %4, %cst {dimension_numbers = #tpu.dot_dimension_numbers<[1], [0], [0], [1], [0, 0, 1, 1], [], []>} : vector<320x16xf32>, vector<16x16xf32>, vector<320x16xf32> -> vector<320x16xf32>
    %16 = vector.extract_strided_slice %15 {offsets = [0, 0], sizes = [64, 16], strides = [1, 1]} : vector<320x16xf32> to vector<64x16xf32>
    %17 = vector.shape_cast %16 : vector<64x16xf32> to vector<4x16x16xf32>
    %18 = vector.extract_strided_slice %15 {offsets = [64, 0], sizes = [64, 16], strides = [1, 1]} : vector<320x16xf32> to vector<64x16xf32>
    %19 = vector.shape_cast %18 : vector<64x16xf32> to vector<4x16x16xf32>
    %20 = vector.extract_strided_slice %15 {offsets = [128, 0], sizes = [64, 16], strides = [1, 1]} : vector<320x16xf32> to vector<64x16xf32>
    %21 = vector.shape_cast %20 : vector<64x16xf32> to vector<4x16x16xf32>
    %22 = vector.extract_strided_slice %15 {offsets = [192, 0], sizes = [64, 16], strides = [1, 1]} : vector<320x16xf32> to vector<64x16xf32>
    %23 = vector.shape_cast %22 : vector<64x16xf32> to vector<4x16x16xf32>
    %24 = vector.extract_strided_slice %15 {offsets = [256, 0], sizes = [64, 16], strides = [1, 1]} : vector<320x16xf32> to vector<64x16xf32>
    %25 = vector.shape_cast %24 : vector<64x16xf32> to vector<4x16x16xf32>
    %26 = vector.extract_strided_slice %17 {offsets = [0, 0, 0], sizes = [1, 16, 16], strides = [1, 1, 1]} : vector<4x16x16xf32> to vector<1x16x16xf32>
    %27 = vector.shape_cast %26 : vector<1x16x16xf32> to vector<16x16xf32>
    %cst_11 = arith.constant dense<0.000000e+00> : vector<16x16xf32>
    %28 = tpu.matmul %5, %27, %cst_11 {dimension_numbers = #tpu.dot_dimension_numbers<[1], [0], [0], [1], [0, 0, 1, 1], [], []>} : vector<16x16xf32>, vector<16x16xf32>, vector<16x16xf32> -> vector<16x16xf32>
    %29 = vector.extract_strided_slice %17 {offsets = [1, 0, 0], sizes = [1, 16, 16], strides = [1, 1, 1]} : vector<4x16x16xf32> to vector<1x16x16xf32>
    %30 = vector.shape_cast %29 : vector<1x16x16xf32> to vector<16x16xf32>
    %cst_12 = arith.constant dense<0.000000e+00> : vector<16x16xf32>
    %31 = tpu.matmul %5, %30, %cst_12 {dimension_numbers = #tpu.dot_dimension_numbers<[1], [0], [0], [1], [0, 0, 1, 1], [], []>} : vector<16x16xf32>, vector<16x16xf32>, vector<16x16xf32> -> vector<16x16xf32>
    %32 = vector.extract_strided_slice %17 {offsets = [2, 0, 0], sizes = [1, 16, 16], strides = [1, 1, 1]} : vector<4x16x16xf32> to vector<1x16x16xf32>
    %33 = vector.shape_cast %32 : vector<1x16x16xf32> to vector<16x16xf32>
    %cst_13 = arith.constant dense<0.000000e+00> : vector<16x16xf32>
    %34 = tpu.matmul %5, %33, %cst_13 {dimension_numbers = #tpu.dot_dimension_numbers<[1], [0], [0], [1], [0, 0, 1, 1], [], []>} : vector<16x16xf32>, vector<16x16xf32>, vector<16x16xf32> -> vector<16x16xf32>
    %35 = vector.extract_strided_slice %17 {offsets = [3, 0, 0], sizes = [1, 16, 16], strides = [1, 1, 1]} : vector<4x16x16xf32> to vector<1x16x16xf32>
    %36 = vector.shape_cast %35 : vector<1x16x16xf32> to vector<16x16xf32>
    %cst_14 = arith.constant dense<0.000000e+00> : vector<16x16xf32>
    %37 = tpu.matmul %5, %36, %cst_14 {dimension_numbers = #tpu.dot_dimension_numbers<[1], [0], [0], [1], [0, 0, 1, 1], [], []>} : vector<16x16xf32>, vector<16x16xf32>, vector<16x16xf32> -> vector<16x16xf32>
    %38 = vector.shape_cast %28 : vector<16x16xf32> to vector<1x16x16xf32>
    %39 = vector.shape_cast %31 : vector<16x16xf32> to vector<1x16x16xf32>
    %40 = vector.shape_cast %34 : vector<16x16xf32> to vector<1x16x16xf32>
    %41 = vector.shape_cast %37 : vector<16x16xf32> to vector<1x16x16xf32>
    %42 = tpu.concatenate %38, %39, %40, %41 in 0 : vector<1x16x16xf32>, vector<1x16x16xf32>, vector<1x16x16xf32>, vector<1x16x16xf32> -> vector<4x16x16xf32>
    %43 = vector.extract_strided_slice %19 {offsets = [0, 0, 0], sizes = [1, 16, 16], strides = [1, 1, 1]} : vector<4x16x16xf32> to vector<1x16x16xf32>
    %44 = vector.shape_cast %43 : vector<1x16x16xf32> to vector<16x16xf32>
    %cst_15 = arith.constant dense<0.000000e+00> : vector<16x16xf32>
    %45 = tpu.matmul %5, %44, %cst_15 {dimension_numbers = #tpu.dot_dimension_numbers<[1], [0], [0], [1], [0, 0, 1, 1], [], []>} : vector<16x16xf32>, vector<16x16xf32>, vector<16x16xf32> -> vector<16x16xf32>
    %46 = vector.extract_strided_slice %19 {offsets = [1, 0, 0], sizes = [1, 16, 16], strides = [1, 1, 1]} : vector<4x16x16xf32> to vector<1x16x16xf32>
    %47 = vector.shape_cast %46 : vector<1x16x16xf32> to vector<16x16xf32>
    %cst_16 = arith.constant dense<0.000000e+00> : vector<16x16xf32>
    %48 = tpu.matmul %5, %47, %cst_16 {dimension_numbers = #tpu.dot_dimension_numbers<[1], [0], [0], [1], [0, 0, 1, 1], [], []>} : vector<16x16xf32>, vector<16x16xf32>, vector<16x16xf32> -> vector<16x16xf32>
    %49 = vector.extract_strided_slice %19 {offsets = [2, 0, 0], sizes = [1, 16, 16], strides = [1, 1, 1]} : vector<4x16x16xf32> to vector<1x16x16xf32>
    %50 = vector.shape_cast %49 : vector<1x16x16xf32> to vector<16x16xf32>
    %cst_17 = arith.constant dense<0.000000e+00> : vector<16x16xf32>
    %51 = tpu.matmul %5, %50, %cst_17 {dimension_numbers = #tpu.dot_dimension_numbers<[1], [0], [0], [1], [0, 0, 1, 1], [], []>} : vector<16x16xf32>, vector<16x16xf32>, vector<16x16xf32> -> vector<16x16xf32>
    %52 = vector.extract_strided_slice %19 {offsets = [3, 0, 0], sizes = [1, 16, 16], strides = [1, 1, 1]} : vector<4x16x16xf32> to vector<1x16x16xf32>
    %53 = vector.shape_cast %52 : vector<1x16x16xf32> to vector<16x16xf32>
    %cst_18 = arith.constant dense<0.000000e+00> : vector<16x16xf32>
    %54 = tpu.matmul %5, %53, %cst_18 {dimension_numbers = #tpu.dot_dimension_numbers<[1], [0], [0], [1], [0, 0, 1, 1], [], []>} : vector<16x16xf32>, vector<16x16xf32>, vector<16x16xf32> -> vector<16x16xf32>
    %55 = vector.shape_cast %45 : vector<16x16xf32> to vector<1x16x16xf32>
    %56 = vector.shape_cast %48 : vector<16x16xf32> to vector<1x16x16xf32>
    %57 = vector.shape_cast %51 : vector<16x16xf32> to vector<1x16x16xf32>
    %58 = vector.shape_cast %54 : vector<16x16xf32> to vector<1x16x16xf32>
    %59 = tpu.concatenate %55, %56, %57, %58 in 0 : vector<1x16x16xf32>, vector<1x16x16xf32>, vector<1x16x16xf32>, vector<1x16x16xf32> -> vector<4x16x16xf32>
    %60 = vector.extract_strided_slice %21 {offsets = [0, 0, 0], sizes = [1, 16, 16], strides = [1, 1, 1]} : vector<4x16x16xf32> to vector<1x16x16xf32>
    %61 = vector.shape_cast %60 : vector<1x16x16xf32> to vector<16x16xf32>
    %cst_19 = arith.constant dense<0.000000e+00> : vector<16x16xf32>
    %62 = tpu.matmul %5, %61, %cst_19 {dimension_numbers = #tpu.dot_dimension_numbers<[1], [0], [0], [1], [0, 0, 1, 1], [], []>} : vector<16x16xf32>, vector<16x16xf32>, vector<16x16xf32> -> vector<16x16xf32>
    %63 = vector.extract_strided_slice %21 {offsets = [1, 0, 0], sizes = [1, 16, 16], strides = [1, 1, 1]} : vector<4x16x16xf32> to vector<1x16x16xf32>
    %64 = vector.shape_cast %63 : vector<1x16x16xf32> to vector<16x16xf32>
    %cst_20 = arith.constant dense<0.000000e+00> : vector<16x16xf32>
    %65 = tpu.matmul %5, %64, %cst_20 {dimension_numbers = #tpu.dot_dimension_numbers<[1], [0], [0], [1], [0, 0, 1, 1], [], []>} : vector<16x16xf32>, vector<16x16xf32>, vector<16x16xf32> -> vector<16x16xf32>
    %66 = vector.extract_strided_slice %21 {offsets = [2, 0, 0], sizes = [1, 16, 16], strides = [1, 1, 1]} : vector<4x16x16xf32> to vector<1x16x16xf32>
    %67 = vector.shape_cast %66 : vector<1x16x16xf32> to vector<16x16xf32>
    %cst_21 = arith.constant dense<0.000000e+00> : vector<16x16xf32>
    %68 = tpu.matmul %5, %67, %cst_21 {dimension_numbers = #tpu.dot_dimension_numbers<[1], [0], [0], [1], [0, 0, 1, 1], [], []>} : vector<16x16xf32>, vector<16x16xf32>, vector<16x16xf32> -> vector<16x16xf32>
    %69 = vector.extract_strided_slice %21 {offsets = [3, 0, 0], sizes = [1, 16, 16], strides = [1, 1, 1]} : vector<4x16x16xf32> to vector<1x16x16xf32>
    %70 = vector.shape_cast %69 : vector<1x16x16xf32> to vector<16x16xf32>
    %cst_22 = arith.constant dense<0.000000e+00> : vector<16x16xf32>
    %71 = tpu.matmul %5, %70, %cst_22 {dimension_numbers = #tpu.dot_dimension_numbers<[1], [0], [0], [1], [0, 0, 1, 1], [], []>} : vector<16x16xf32>, vector<16x16xf32>, vector<16x16xf32> -> vector<16x16xf32>
    %72 = vector.shape_cast %62 : vector<16x16xf32> to vector<1x16x16xf32>
    %73 = vector.shape_cast %65 : vector<16x16xf32> to vector<1x16x16xf32>
    %74 = vector.shape_cast %68 : vector<16x16xf32> to vector<1x16x16xf32>
    %75 = vector.shape_cast %71 : vector<16x16xf32> to vector<1x16x16xf32>
    %76 = tpu.concatenate %72, %73, %74, %75 in 0 : vector<1x16x16xf32>, vector<1x16x16xf32>, vector<1x16x16xf32>, vector<1x16x16xf32> -> vector<4x16x16xf32>
    %77 = vector.extract_strided_slice %23 {offsets = [0, 0, 0], sizes = [1, 16, 16], strides = [1, 1, 1]} : vector<4x16x16xf32> to vector<1x16x16xf32>
    %78 = vector.shape_cast %77 : vector<1x16x16xf32> to vector<16x16xf32>
    %cst_23 = arith.constant dense<0.000000e+00> : vector<16x16xf32>
    %79 = tpu.matmul %5, %78, %cst_23 {dimension_numbers = #tpu.dot_dimension_numbers<[1], [0], [0], [1], [0, 0, 1, 1], [], []>} : vector<16x16xf32>, vector<16x16xf32>, vector<16x16xf32> -> vector<16x16xf32>
    %80 = vector.extract_strided_slice %23 {offsets = [1, 0, 0], sizes = [1, 16, 16], strides = [1, 1, 1]} : vector<4x16x16xf32> to vector<1x16x16xf32>
    %81 = vector.shape_cast %80 : vector<1x16x16xf32> to vector<16x16xf32>
    %cst_24 = arith.constant dense<0.000000e+00> : vector<16x16xf32>
    %82 = tpu.matmul %5, %81, %cst_24 {dimension_numbers = #tpu.dot_dimension_numbers<[1], [0], [0], [1], [0, 0, 1, 1], [], []>} : vector<16x16xf32>, vector<16x16xf32>, vector<16x16xf32> -> vector<16x16xf32>
    %83 = vector.extract_strided_slice %23 {offsets = [2, 0, 0], sizes = [1, 16, 16], strides = [1, 1, 1]} : vector<4x16x16xf32> to vector<1x16x16xf32>
    %84 = vector.shape_cast %83 : vector<1x16x16xf32> to vector<16x16xf32>
    %cst_25 = arith.constant dense<0.000000e+00> : vector<16x16xf32>
    %85 = tpu.matmul %5, %84, %cst_25 {dimension_numbers = #tpu.dot_dimension_numbers<[1], [0], [0], [1], [0, 0, 1, 1], [], []>} : vector<16x16xf32>, vector<16x16xf32>, vector<16x16xf32> -> vector<16x16xf32>
    %86 = vector.extract_strided_slice %23 {offsets = [3, 0, 0], sizes = [1, 16, 16], strides = [1, 1, 1]} : vector<4x16x16xf32> to vector<1x16x16xf32>
    %87 = vector.shape_cast %86 : vector<1x16x16xf32> to vector<16x16xf32>
    %cst_26 = arith.constant dense<0.000000e+00> : vector<16x16xf32>
    %88 = tpu.matmul %5, %87, %cst_26 {dimension_numbers = #tpu.dot_dimension_numbers<[1], [0], [0], [1], [0, 0, 1, 1], [], []>} : vector<16x16xf32>, vector<16x16xf32>, vector<16x16xf32> -> vector<16x16xf32>
    %89 = vector.shape_cast %79 : vector<16x16xf32> to vector<1x16x16xf32>
    %90 = vector.shape_cast %82 : vector<16x16xf32> to vector<1x16x16xf32>
    %91 = vector.shape_cast %85 : vector<16x16xf32> to vector<1x16x16xf32>
    %92 = vector.shape_cast %88 : vector<16x16xf32> to vector<1x16x16xf32>
    %93 = tpu.concatenate %89, %90, %91, %92 in 0 : vector<1x16x16xf32>, vector<1x16x16xf32>, vector<1x16x16xf32>, vector<1x16x16xf32> -> vector<4x16x16xf32>
    %94 = vector.extract_strided_slice %25 {offsets = [0, 0, 0], sizes = [1, 16, 16], strides = [1, 1, 1]} : vector<4x16x16xf32> to vector<1x16x16xf32>
    %95 = vector.shape_cast %94 : vector<1x16x16xf32> to vector<16x16xf32>
    %cst_27 = arith.constant dense<0.000000e+00> : vector<16x16xf32>
    %96 = tpu.matmul %5, %95, %cst_27 {dimension_numbers = #tpu.dot_dimension_numbers<[1], [0], [0], [1], [0, 0, 1, 1], [], []>} : vector<16x16xf32>, vector<16x16xf32>, vector<16x16xf32> -> vector<16x16xf32>
    %97 = vector.extract_strided_slice %25 {offsets = [1, 0, 0], sizes = [1, 16, 16], strides = [1, 1, 1]} : vector<4x16x16xf32> to vector<1x16x16xf32>
    %98 = vector.shape_cast %97 : vector<1x16x16xf32> to vector<16x16xf32>
    %cst_28 = arith.constant dense<0.000000e+00> : vector<16x16xf32>
    %99 = tpu.matmul %5, %98, %cst_28 {dimension_numbers = #tpu.dot_dimension_numbers<[1], [0], [0], [1], [0, 0, 1, 1], [], []>} : vector<16x16xf32>, vector<16x16xf32>, vector<16x16xf32> -> vector<16x16xf32>
    %100 = vector.extract_strided_slice %25 {offsets = [2, 0, 0], sizes = [1, 16, 16], strides = [1, 1, 1]} : vector<4x16x16xf32> to vector<1x16x16xf32>
    %101 = vector.shape_cast %100 : vector<1x16x16xf32> to vector<16x16xf32>
    %cst_29 = arith.constant dense<0.000000e+00> : vector<16x16xf32>
    %102 = tpu.matmul %5, %101, %cst_29 {dimension_numbers = #tpu.dot_dimension_numbers<[1], [0], [0], [1], [0, 0, 1, 1], [], []>} : vector<16x16xf32>, vector<16x16xf32>, vector<16x16xf32> -> vector<16x16xf32>
    %103 = vector.extract_strided_slice %25 {offsets = [3, 0, 0], sizes = [1, 16, 16], strides = [1, 1, 1]} : vector<4x16x16xf32> to vector<1x16x16xf32>
    %104 = vector.shape_cast %103 : vector<1x16x16xf32> to vector<16x16xf32>
    %cst_30 = arith.constant dense<0.000000e+00> : vector<16x16xf32>
    %105 = tpu.matmul %5, %104, %cst_30 {dimension_numbers = #tpu.dot_dimension_numbers<[1], [0], [0], [1], [0, 0, 1, 1], [], []>} : vector<16x16xf32>, vector<16x16xf32>, vector<16x16xf32> -> vector<16x16xf32>
    %106 = vector.shape_cast %96 : vector<16x16xf32> to vector<1x16x16xf32>
    %107 = vector.shape_cast %99 : vector<16x16xf32> to vector<1x16x16xf32>
    %108 = vector.shape_cast %102 : vector<16x16xf32> to vector<1x16x16xf32>
    %109 = vector.shape_cast %105 : vector<16x16xf32> to vector<1x16x16xf32>
    %110 = tpu.concatenate %106, %107, %108, %109 in 0 : vector<1x16x16xf32>, vector<1x16x16xf32>, vector<1x16x16xf32>, vector<1x16x16xf32> -> vector<4x16x16xf32>
    %111 = arith.mulf %42, %42 : vector<4x16x16xf32>
    %112 = arith.mulf %59, %59 : vector<4x16x16xf32>
    %113 = arith.mulf %42, %59 : vector<4x16x16xf32>
    %114 = arith.subf %76, %111 : vector<4x16x16xf32>
    %115 = arith.subf %93, %112 : vector<4x16x16xf32>
    %116 = arith.subf %110, %113 : vector<4x16x16xf32>
    %cst_31 = arith.constant 2.000000e+00 : f32
    %117 = vector.broadcast %cst_31 : f32 to vector<4x16x16xf32>
    %118 = arith.mulf %117, %113 : vector<4x16x16xf32>
    %cst_32 = arith.constant 9.99999974E-5 : f32
    %119 = vector.broadcast %cst_32 : f32 to vector<4x16x16xf32>
    %120 = arith.addf %118, %119 : vector<4x16x16xf32>
    %cst_33 = arith.constant 2.000000e+00 : f32
    %121 = vector.broadcast %cst_33 : f32 to vector<4x16x16xf32>
    %122 = arith.mulf %121, %116 : vector<4x16x16xf32>
    %cst_34 = arith.constant 8.99999984E-4 : f32
    %123 = vector.broadcast %cst_34 : f32 to vector<4x16x16xf32>
    %124 = arith.addf %122, %123 : vector<4x16x16xf32>
    %125 = arith.mulf %120, %124 : vector<4x16x16xf32>
    %126 = arith.addf %111, %112 : vector<4x16x16xf32>
    %cst_35 = arith.constant 9.99999974E-5 : f32
    %127 = vector.broadcast %cst_35 : f32 to vector<4x16x16xf32>
    %128 = arith.addf %126, %127 : vector<4x16x16xf32>
    %129 = arith.addf %114, %115 : vector<4x16x16xf32>
    %cst_36 = arith.constant 8.99999984E-4 : f32
    %130 = vector.broadcast %cst_36 : f32 to vector<4x16x16xf32>
    %131 = arith.addf %129, %130 : vector<4x16x16xf32>
    %132 = arith.mulf %128, %131 : vector<4x16x16xf32>
    %133 = tpu.reciprocal %132 {approx = true} : vector<4x16x16xf32> -> vector<4x16x16xf32>
    %134 = arith.mulf %132, %133 : vector<4x16x16xf32>
    %cst_37 = arith.constant 2.000000e+00 : f32
    %135 = vector.broadcast %cst_37 : f32 to vector<4x16x16xf32>
    %136 = arith.subf %135, %134 : vector<4x16x16xf32>
    %137 = arith.mulf %133, %136 : vector<4x16x16xf32>
    %138 = arith.mulf %125, %137 : vector<4x16x16xf32>
    %cst_38 = arith.constant dense<0.000000e+00> : vector<16xf32>
    %139 = vector.multi_reduction <add>, %138, %cst_38 [0, 1] : vector<4x16x16xf32> to vector<16xf32>
    %140 = vector.shape_cast %139 : vector<16xf32> to vector<1x1x16xf32>
    %c0_39 = arith.constant 0 : index
    %c0_40 = arith.constant 0 : index
    %c0_41 = arith.constant 0 : index
    %141 = vector.load %arg6[%c0_39, %c0_40, %c0_41] : memref<1x1x16xf32, #tpu.memory_space<vmem>>, vector<1x1x16xf32>
    tpu.vector_store %arg6[%c0_39, %c0_40, %c0_41], %140 {strides = array<i32>} : memref<1x1x16xf32, #tpu.memory_space<vmem>>, vector<1x1x16xf32>,
    return
  }
  func.func @transform_0(%arg0: i32, %arg1: i32) -> (i32, i32, i32, i32) {
    %c0_i32 = arith.constant 0 : i32
    %c0_i32_0 = arith.constant 0 : i32
    %c0_i32_1 = arith.constant 0 : i32
    return %arg0, %arg1, %c0_i32, %c0_i32_0 : i32, i32, i32, i32
  }
  func.func @transform_1(%arg0: i32, %arg1: i32) -> (i32, i32, i32, i32) {
    %c0_i32 = arith.constant 0 : i32
    %c0_i32_0 = arith.constant 0 : i32
    %c0_i32_1 = arith.constant 0 : i32
    return %arg0, %arg1, %c0_i32, %c0_i32_0 : i32, i32, i32, i32
  }
  func.func @transform_2(%arg0: i32, %arg1: i32) -> (i32, i32) {
    %c0_i32 = arith.constant 0 : i32
    %c0_i32_0 = arith.constant 0 : i32
    %c0_i32_1 = arith.constant 0 : i32
    return %c0_i32, %c0_i32_0 : i32, i32
  }
  func.func @transform_3(%arg0: i32, %arg1: i32) -> (i32, i32) {
    %c0_i32 = arith.constant 0 : i32
    %c0_i32_0 = arith.constant 0 : i32
    %c0_i32_1 = arith.constant 0 : i32
    return %c0_i32, %c0_i32_0 : i32, i32
  }
  func.func @transform_4(%arg0: i32, %arg1: i32) -> (i32, i32, i32) {
    %c0_i32 = arith.constant 0 : i32
    %c0_i32_0 = arith.constant 0 : i32
    return %arg0, %arg1, %c0_i32 : i32, i32, i32
  }
}

</mosaic_0001>

<llo_original>
// kernel: tpu_custom_call.1
$region0: #{tpu_custom_call.1}
  #allocation0 [shape = 'u32[]', space=smem, size = 0x4, offset = 0x4, fixed_abs, tag = 'smem constant byte address 0x4 - core index']
  #allocation1 [shape = 'u32[72,128]{1,0:T(1,128)}', space=vmem, size = 0x9000, scoped, tag = 'internal scratch']
  %s0 = inlined_call_operand.hbm [shape: f32[2,4,16,16], index: 0, kind: input, shape index: {}]
  %s1 = inlined_call_operand.hbm [shape: f32[2,4,16,16], index: 1, kind: input, shape index: {}]
  %s2 = inlined_call_operand.hbm [shape: f32[16,16], index: 2, kind: input, shape index: {}]
  %s3 = inlined_call_operand.hbm [shape: f32[16,16], index: 3, kind: input, shape index: {}]
  %s4 = inlined_call_operand.hbm [shape: f32[2,1,16], index: 4, kind: output, shape index: {}]
  %s5 = sld [smem:[#allocation0]]
  $region65: #{tpu_custom_call.1} parent=0
    _
  %s7 = ssub.s32 1, %s5
  %s8 = scalar_select 0, %s7, %s5
  $region1: #{tpu_custom_call.1} parent=0
    #allocation2 [shape = 'u8[65536]{0}', space=vmem, size = 0x10000, scoped, tag = 'input window, operand 0']
    #allocation3 [shape = 's32[2]{0}', space=sflag, size = 0x8, scoped, tag = 'scoped memory for tpu_custom_call.1']
    #allocation4 [shape = 's32[2]{0}', space=sflag, size = 0x8, scoped, tag = 'scoped memory for tpu_custom_call.1']
    #allocation5 [shape = 'u8[65536]{0}', space=vmem, size = 0x10000, scoped, tag = 'input window, operand 1']
    #allocation6 [shape = 's32[2]{0}', space=sflag, size = 0x8, scoped, tag = 'scoped memory for tpu_custom_call.1']
    #allocation7 [shape = 'u8[8192]{0}', space=vmem, size = 0x2000, scoped, tag = 'input window, operand 2, single buffered']
    #allocation8 [shape = 'u8[8192]{0}', space=vmem, size = 0x2000, scoped, tag = 'input window, operand 3, single buffered']
    #allocation9 [shape = 's32[1]{0}', space=sflag, size = 0x4, scoped, tag = 'scoped memory for tpu_custom_call.1']
    #allocation10 [shape = 'u8[1024]{0}', space=vmem, size = 0x400, scoped, tag = 'output window, operand 0']
    %9 = vsyncpa [#allocation3], 0
    %s10 = scalar_lea.sflag [#allocation3], 1
    %11 = vsyncpa %s10, 0
    %12 = vsyncpa [#allocation6], 0
    %s13 = scalar_lea.sflag [#allocation6], 1
    %14 = vsyncpa %s13, 0
    %15 = vsyncpa [#allocation9], 0
    %16 = vsyncpa [#allocation4], 0
    %s17 = scalar_lea.sflag [#allocation4], 1
    %18 = vsyncpa %s17, 0
    loop: start=0, step=1, limit=4
    $region2: #{tpu_custom_call.1} parent=1 // loop_pre_header
      _
    $region3: #{tpu_custom_call.1} parent=1 // loop_header
      %s20 = sphi 0, %s24
      %p21 = scmp.ge.s32.totalorder %s20, 4
      %s27 = sphi 0, %s39
      %s28 = sphi 0, %s35
      %s29 = sphi 0, %s27
      %s30 = sphi 0, %s28
      %s31 = sphi 0, %s29
      %s32 = sphi 0, %s30
      %s44 = sphi 0, %s46
      %s47 = sphi 0, %s44
      %s48 = sphi 0, %s47
      %s64 = sphi 0, %s48
      %s72 = sphi 0, %s74
      %s75 = sphi 0, %s72
      %s76 = sphi 0, %s75
      %s92 = sphi 0, %s76
      %s96 = sphi 0, %s96
      %s98 = sphi 0, %s96
      %s99 = sphi 0, %s98
      %s113 = sphi 0, %s99
      %s117 = sphi 0, %s117
      %s119 = sphi 0, %s117
      %s120 = sphi 0, %s119
      %s134 = sphi 0, %s120
      %s142 = sphi 0, %s144
      %s145 = sphi 0, %s142
      %s146 = sphi 0, %s145
      %s162 = sphi 0, %s146
    $region4: #{tpu_custom_call.1} parent=1 // loop_header_branch
      %23 = sbr.rel (%p21) target = $region8
    $region5: #{tpu_custom_call.1} parent=1 // loop_body
      %s25 = ssub.s32 %s20, 1
      %s26 = ssub.s32 %s20, 2
      %s33 = sadd.s32 1, %s28
      %p34 = scmp.ge.s32.totalorder %s33, 1
      %s35 = scalar_select %p34, 0, %s33
      %s36 = sadd.s32 1, %s27
      %s37 = scalar_select %p34, %s36, %s27
      %p38 = scmp.ge.s32.totalorder %s37, 2
      %s39 = scalar_select %p38, 0, %s37
      %s40 = ssub.s32 %s27, %s39
      %s41 = ssub.s32 %s28, %s35
      %s42 = sor.u32 %s40, %s41
      %p43 = scmp.eq.s32.totalorder %s42, 0
      %s45 = sadd.s32 %s44, 1
      %s46 = scalar_select %p43, %s44, %s45
      %p49 = pneg %p43
      %p50 = scmp.eq.s32.totalorder %s20, 1
      %p51 = por %p49, %p50
      %p52 = scmp.ne.s32.totalorder %s44, %s47
      %p53 = scmp.eq.s32.totalorder %s20, 0
      %p54 = por %p52, %p53
      %p55 = scmp.ne.s32.totalorder %s44, %s47
      %p56 = scmp.eq.s32.totalorder %s25, 1
      %p57 = por %p55, %p56
      %p58 = scmp.ne.s32.totalorder %s47, %s48
      %p59 = scmp.eq.s32.totalorder %s25, 0
      %p60 = por %p58, %p59
      %p61 = scmp.ne.s32.totalorder %s47, %s48
      %p62 = scmp.eq.s32.totalorder %s26, 1
      %p63 = por %p61, %p62
      %p65 = scmp.ne.s32.totalorder %s48, %s64
      %p66 = scmp.eq.s32.totalorder %s26, 0
      %p67 = por %p65, %p66
      %s68 = ssub.s32 %s27, %s39
      %s69 = ssub.s32 %s28, %s35
      %s70 = sor.u32 %s68, %s69
      %p71 = scmp.eq.s32.totalorder %s70, 0
      %s73 = sadd.s32 %s72, 1
      %s74 = scalar_select %p71, %s72, %s73
      %p77 = pneg %p71
      %p78 = scmp.eq.s32.totalorder %s20, 1
      %p79 = por %p77, %p78
      %p80 = scmp.ne.s32.totalorder %s72, %s75
      %p81 = scmp.eq.s32.totalorder %s20, 0
      %p82 = por %p80, %p81
      %p83 = scmp.ne.s32.totalorder %s72, %s75
      %p84 = scmp.eq.s32.totalorder %s25, 1
      %p85 = por %p83, %p84
      %p86 = scmp.ne.s32.totalorder %s75, %s76
      %p87 = scmp.eq.s32.totalorder %s25, 0
      %p88 = por %p86, %p87
      %p89 = scmp.ne.s32.totalorder %s75, %s76
      %p90 = scmp.eq.s32.totalorder %s26, 1
      %p91 = por %p89, %p90
      %p93 = scmp.ne.s32.totalorder %s76, %s92
      %p94 = scmp.eq.s32.totalorder %s26, 0
      %p95 = por %p93, %p94
      %s97 = sadd.s32 %s96, 1
      %p100 = scmp.eq.s32.totalorder %s20, 1
      %p101 = scmp.ne.s32.totalorder %s96, %s98
      %p102 = scmp.eq.s32.totalorder %s20, 0
      %p103 = por %p101, %p102
      %p104 = scmp.ne.s32.totalorder %s96, %s98
      %p105 = scmp.eq.s32.totalorder %s25, 1
      %p106 = por %p104, %p105
      %p107 = scmp.ne.s32.totalorder %s98, %s99
      %p108 = scmp.eq.s32.totalorder %s25, 0
      %p109 = por %p107, %p108
      %p110 = scmp.ne.s32.totalorder %s98, %s99
      %p111 = scmp.eq.s32.totalorder %s26, 1
      %p112 = por %p110, %p111
      %p114 = scmp.ne.s32.totalorder %s99, %s113
      %p115 = scmp.eq.s32.totalorder %s26, 0
      %p116 = por %p114, %p115
      %s118 = sadd.s32 %s117, 1
      %p121 = scmp.eq.s32.totalorder %s20, 1
      %p122 = scmp.ne.s32.totalorder %s117, %s119
      %p123 = scmp.eq.s32.totalorder %s20, 0
      %p124 = por %p122, %p123
      %p125 = scmp.ne.s32.totalorder %s117, %s119
      %p126 = scmp.eq.s32.totalorder %s25, 1
      %p127 = por %p125, %p126
      %p128 = scmp.ne.s32.totalorder %s119, %s120
      %p129 = scmp.eq.s32.totalorder %s25, 0
      %p130 = por %p128, %p129
      %p131 = scmp.ne.s32.totalorder %s119, %s120
      %p132 = scmp.eq.s32.totalorder %s26, 1
      %p133 = por %p131, %p132
      %p135 = scmp.ne.s32.totalorder %s120, %s134
      %p136 = scmp.eq.s32.totalorder %s26, 0
      %p137 = por %p135, %p136
      %s138 = ssub.s32 %s27, %s39
      %s139 = ssub.s32 %s28, %s35
      %s140 = sor.u32 %s138, %s139
      %p141 = scmp.eq.s32.totalorder %s140, 0
      %s143 = sadd.s32 %s142, 1
      %s144 = scalar_select %p141, %s142, %s143
      %p147 = pneg %p141
      %p148 = scmp.eq.s32.totalorder %s20, 1
      %p149 = por %p147, %p148
      %p150 = scmp.ne.s32.totalorder %s142, %s145
      %p151 = scmp.eq.s32.totalorder %s20, 0
      %p152 = por %p150, %p151
      %p153 = scmp.ne.s32.totalorder %s142, %s145
      %p154 = scmp.eq.s32.totalorder %s25, 1
      %p155 = por %p153, %p154
      %p156 = scmp.ne.s32.totalorder %s145, %s146
      %p157 = scmp.eq.s32.totalorder %s25, 0
      %p158 = por %p156, %p157
      %p159 = scmp.ne.s32.totalorder %s145, %s146
      %p160 = scmp.eq.s32.totalorder %s26, 1
      %p161 = por %p159, %p160
      %p163 = scmp.ne.s32.totalorder %s146, %s162
      %p164 = scmp.eq.s32.totalorder %s26, 0
      %p165 = por %p163, %p164
      %p166 = scmp.le.s32.totalorder 1, %s20
      %p167 = scmp.lt.s32.totalorder %s20, 3
      %p168 = pnand %p166, %p167
      %p169 = pneg %p168
      // Predicated region
      $region9: #{tpu_custom_call.1} parent=5 // pred_check
        _
      $region10: #{tpu_custom_call.1} parent=5 // pred_check_branch
        %171 = sbr.rel (%p168) target = $region12
      $region11: #{tpu_custom_call.1} parent=5 // pred_region
        %s172 = ssub.s32 %s20, 1
        // Predicated region
        $region13: #{tpu_custom_call.1} parent=11 // pred_check
          %p173 = pneg %p109
        $region14: #{tpu_custom_call.1} parent=11 // pred_check_branch
          %175 = sbr.rel (%p173) target = $region16
        $region15: #{tpu_custom_call.1} parent=11 // pred_region
          %177 = vsyncadd [#allocation6], 0
          %s178 = sshll.u32 %s2, 4
          %s179 = int_to_ptr.hbm [resolvable:$true] %s178
          %s180 = sshll.u32 [#allocation7], 4
          %s181 = int_to_ptr.vmem [resolvable:$true] %s180
          %186 = dma.hbm_to_vmem [thread:$0]  %s179, 256, %s181, [#allocation6], 128, 128, 8
        $region16: #{tpu_custom_call.1} parent=11 // pred_fallthru
          _
        // Predicated region
        $region17: #{tpu_custom_call.1} parent=11 // pred_check
          %p187 = pneg %p130
        $region18: #{tpu_custom_call.1} parent=11 // pred_check_branch
          %189 = sbr.rel (%p187) target = $region20
        $region19: #{tpu_custom_call.1} parent=11 // pred_region
          %191 = vsyncadd [#allocation9], 0
          %s192 = sshll.u32 %s3, 4
          %s193 = int_to_ptr.hbm [resolvable:$true] %s192
          %s194 = sshll.u32 [#allocation8], 4
          %s195 = int_to_ptr.vmem [resolvable:$true] %s194
          %200 = dma.hbm_to_vmem [thread:$0]  %s193, 256, %s195, [#allocation9], 128, 128, 8
        $region20: #{tpu_custom_call.1} parent=11 // pred_fallthru
          _
      $region12: #{tpu_custom_call.1} parent=5 // pred_fallthru
        _
      %p201 = scmp.lt.s32.totalorder %s20, 2
      // Predicated region
      $region21: #{tpu_custom_call.1} parent=5 // pred_check
        %p202 = pneg %p201
      $region22: #{tpu_custom_call.1} parent=5 // pred_check_branch
        %204 = sbr.rel (%p202) target = $region24
      $region23: #{tpu_custom_call.1} parent=5 // pred_region
        // Predicated region
        $region25: #{tpu_custom_call.1} parent=23 // pred_check
          %p205 = pneg %p54
        $region26: #{tpu_custom_call.1} parent=23 // pred_check_branch
          %207 = sbr.rel (%p205) target = $region28
        $region27: #{tpu_custom_call.1} parent=23 // pred_region
          %s208 = sand.u32 %s44, 1
          %s209 = scalar_lea.sflag [#allocation3], %s208
          %s210 = sand.u32 %s44, 1
          %s211 = smul.addr %s210, 64
          %s212 = scalar_lea.vmem [#allocation2], %s211
          %s213 = smul.u32 4, %s28
          %215 = vsyncadd %s209, 0
          %s216 = smul.addr %s213, 2
          %s217 = smul.addr %s27, 8
          %s218 = sadd.s32 %s216, %s217
          %s219 = smul.addr %s218, 8
          %s220 = scalar_lea.hbm %s0, %s219
          %s221 = sshll.u32 %s220, 4
          %s222 = int_to_ptr.hbm [resolvable:$true] %s221
          %s223 = sshll.u32 %s212, 4
          %s224 = int_to_ptr.vmem [resolvable:$true] %s223
          %229 = dma.hbm_to_vmem [thread:$0]  %s222, 1024, %s224, %s209, 128, 128, 8
        $region28: #{tpu_custom_call.1} parent=23 // pred_fallthru
          _
        // Predicated region
        $region29: #{tpu_custom_call.1} parent=23 // pred_check
          %p230 = pneg %p82
        $region30: #{tpu_custom_call.1} parent=23 // pred_check_branch
          %232 = sbr.rel (%p230) target = $region32
        $region31: #{tpu_custom_call.1} parent=23 // pred_region
          %s233 = sand.u32 %s20, 1
          %s234 = scalar_lea.sflag [#allocation6], %s233
          %s235 = sand.u32 %s72, 1
          %s236 = smul.addr %s235, 64
          %s237 = scalar_lea.vmem [#allocation5], %s236
          %s238 = smul.u32 4, %s28
          %240 = vsyncadd %s234, 0
          %s241 = smul.addr %s238, 2
          %s242 = smul.addr %s27, 8
          %s243 = sadd.s32 %s241, %s242
          %s244 = smul.addr %s243, 8
          %s245 = scalar_lea.hbm %s1, %s244
          %s246 = sshll.u32 %s245, 4
          %s247 = int_to_ptr.hbm [resolvable:$true] %s246
          %s248 = sshll.u32 %s237, 4
          %s249 = int_to_ptr.vmem [resolvable:$true] %s248
          %254 = dma.hbm_to_vmem [thread:$0]  %s247, 1024, %s249, %s234, 128, 128, 8
        $region32: #{tpu_custom_call.1} parent=23 // pred_fallthru
          _
      $region24: #{tpu_custom_call.1} parent=5 // pred_fallthru
        _
      %p255 = scmp.le.s32.totalorder 1, %s20
      %p256 = scmp.lt.s32.totalorder %s20, 3
      %p257 = pnand %p255, %p256
      %p258 = pneg %p257
      // Predicated region
      $region33: #{tpu_custom_call.1} parent=5 // pred_check
        _
      $region34: #{tpu_custom_call.1} parent=5 // pred_check_branch
        %260 = sbr.rel (%p257) target = $region36
      $region35: #{tpu_custom_call.1} parent=5 // pred_region
        %s261 = ssub.s32 %s20, 1
        %s262 = sand.u32 %s47, 1
        %s263 = scalar_lea.sflag [#allocation3], %s262
        %s264 = sand.u32 %s47, 1
        %s265 = smul.addr %s264, 64
        %s266 = scalar_lea.vmem [#allocation2], %s265
        // Predicated region
        $region37: #{tpu_custom_call.1} parent=35 // pred_check
          %p267 = pneg %p60
        $region38: #{tpu_custom_call.1} parent=35 // pred_check_branch
          %269 = sbr.rel (%p267) target = $region40
        $region39: #{tpu_custom_call.1} parent=35 // pred_region
          %271 = dma.done %s263, 1024
        $region40: #{tpu_custom_call.1} parent=35 // pred_fallthru
          _
        %s272 = sand.u32 %s25, 1
        %s273 = scalar_lea.sflag [#allocation6], %s272
        %s274 = sand.u32 %s75, 1
        %s275 = smul.addr %s274, 64
        %s276 = scalar_lea.vmem [#allocation5], %s275
        // Predicated region
        $region41: #{tpu_custom_call.1} parent=35 // pred_check
          %p277 = pneg %p88
        $region42: #{tpu_custom_call.1} parent=35 // pred_check_branch
          %279 = sbr.rel (%p277) target = $region44
        $region43: #{tpu_custom_call.1} parent=35 // pred_region
          %281 = dma.done %s273, 1024
        $region44: #{tpu_custom_call.1} parent=35 // pred_fallthru
          _
        // Predicated region
        $region45: #{tpu_custom_call.1} parent=35 // pred_check
          %p282 = pneg %p109
        $region46: #{tpu_custom_call.1} parent=35 // pred_check_branch
          %284 = sbr.rel (%p282) target = $region48
        $region47: #{tpu_custom_call.1} parent=35 // pred_region
          %286 = dma.done [#allocation6], 256
        $region48: #{tpu_custom_call.1} parent=35 // pred_fallthru
          _
        // Predicated region
        $region49: #{tpu_custom_call.1} parent=35 // pred_check
          %p287 = pneg %p130
        $region50: #{tpu_custom_call.1} parent=35 // pred_check_branch
          %289 = sbr.rel (%p287) target = $region52
        $region51: #{tpu_custom_call.1} parent=35 // pred_region
          %291 = dma.done [#allocation9], 256
        $region52: #{tpu_custom_call.1} parent=35 // pred_fallthru
          _
        %s292 = sand.u32 %s47, 1
        %s293 = scalar_lea.sflag [#allocation3], %s292
        %s294 = sand.u32 %s47, 1
        %s295 = smul.addr %s294, 64
        %s296 = scalar_lea.vmem [#allocation2], %s295
        %p297 = pneg %p60
        %p298 = pneg %p57
        %s299 = sand.u32 %s25, 1
        %s300 = scalar_lea.sflag [#allocation6], %s299
        %s301 = sand.u32 %s75, 1
        %s302 = smul.addr %s301, 64
        %s303 = scalar_lea.vmem [#allocation5], %s302
        %p304 = pneg %p88
        %p305 = pneg %p85
        %p306 = pneg %p109
        %p307 = pneg %p106
        %p308 = pneg %p130
        %p309 = pneg %p127
        %p310 = pneg %p158
        %p311 = pneg %p155
        %s312 = sand.u32 %s145, 1
        %s313 = scalar_lea.sflag [#allocation4], %s312
        %s314 = sand.u32 %s145, 1
        %s315 = scalar_lea.vmem [#allocation10], %s314
        %s316 = smul.u32 4, %s30
        %s317 = smul.u32 4, %s30
        %v318 = vld [vmem:[%s266] sm:$0xff]
        %v319 = vld [vmem:[%s266 + $0x8] sm:$0xff]
        %v320 = vld [vmem:[%s266 + $0x10] sm:$0xff]
        %v321 = vld [vmem:[%s266 + $0x18] sm:$0xff]
        %v322 = vld [vmem:[%s266 + $0x20] sm:$0xff]
        %v323 = vld [vmem:[%s266 + $0x28] sm:$0xff]
        %v324 = vld [vmem:[%s266 + $0x30] sm:$0xff]
        %v325 = vld [vmem:[%s266 + $0x38] sm:$0xff]
        %v326 = vld [vmem:[%s276] sm:$0xff]
        %v327 = vld [vmem:[%s276 + $0x8] sm:$0xff]
        %v328 = vld [vmem:[%s276 + $0x10] sm:$0xff]
        %v329 = vld [vmem:[%s276 + $0x18] sm:$0xff]
        %v330 = vld [vmem:[%s276 + $0x20] sm:$0xff]
        %v331 = vld [vmem:[%s276 + $0x28] sm:$0xff]
        %v332 = vld [vmem:[%s276 + $0x30] sm:$0xff]
        %v333 = vld [vmem:[%s276 + $0x38] sm:$0xff]
        %v334 = vld [vmem:[#allocation7] sm:$0xff]
        %v335 = vld [vmem:[#allocation7 + $0x8] sm:$0xff]
        %v336 = vld [vmem:[#allocation8] sm:$0xff]
        %v337 = vld [vmem:[#allocation8 + $0x8] sm:$0xff]
        %v338 = vmul.f32 %v318, %v318
        %v339 = vmul.f32 %v319, %v319
        %v340 = vmul.f32 %v320, %v320
        %v341 = vmul.f32 %v321, %v321
        %v342 = vmul.f32 %v322, %v322
        %v343 = vmul.f32 %v323, %v323
        %v344 = vmul.f32 %v324, %v324
        %v345 = vmul.f32 %v325, %v325
        %v346 = vmul.f32 %v326, %v326
        %v347 = vmul.f32 %v327, %v327
        %v348 = vmul.f32 %v328, %v328
        %v349 = vmul.f32 %v329, %v329
        %v350 = vmul.f32 %v330, %v330
        %v351 = vmul.f32 %v331, %v331
        %v352 = vmul.f32 %v332, %v332
        %v353 = vmul.f32 %v333, %v333
        %v354 = vmul.f32 %v318, %v326
        %v355 = vmul.f32 %v319, %v327
        %v356 = vmul.f32 %v320, %v328
        %v357 = vmul.f32 %v321, %v329
        %v358 = vmul.f32 %v322, %v330
        %v359 = vmul.f32 %v323, %v331
        %v360 = vmul.f32 %v324, %v332
        %v361 = vmul.f32 %v325, %v333
        %vm362 = vcmask 130048
        %v364 = vsel %vm362, %v318, 0
        %v367 = vsel %vm362, %v319, 0
        %v370 = vsel %vm362, %v320, 0
        %v373 = vsel %vm362, %v321, 0
        %v376 = vsel %vm362, %v322, 0
        %v379 = vsel %vm362, %v323, 0
        %v382 = vsel %vm362, %v324, 0
        %v385 = vsel %vm362, %v325, 0
        %v388 = vsel %vm362, %v326, 0
        %v391 = vsel %vm362, %v327, 0
        %v394 = vsel %vm362, %v328, 0
        %v397 = vsel %vm362, %v329, 0
        %v400 = vsel %vm362, %v330, 0
        %v403 = vsel %vm362, %v331, 0
        %v406 = vsel %vm362, %v332, 0
        %v409 = vsel %vm362, %v333, 0
        %v412 = vsel %vm362, %v338, 0
        %v415 = vsel %vm362, %v339, 0
        %v418 = vsel %vm362, %v340, 0
        %v421 = vsel %vm362, %v341, 0
        %v424 = vsel %vm362, %v342, 0
        %v427 = vsel %vm362, %v343, 0
        %v430 = vsel %vm362, %v344, 0
        %v433 = vsel %vm362, %v345, 0
        %v436 = vsel %vm362, %v346, 0
        %v439 = vsel %vm362, %v347, 0
        %v442 = vsel %vm362, %v348, 0
        %v445 = vsel %vm362, %v349, 0
        %v448 = vsel %vm362, %v350, 0
        %v451 = vsel %vm362, %v351, 0
        %v454 = vsel %vm362, %v352, 0
        %v457 = vsel %vm362, %v353, 0
        %v460 = vsel %vm362, %v354, 0
        %v463 = vsel %vm362, %v355, 0
        %v466 = vsel %vm362, %v356, 0
        %v469 = vsel %vm362, %v357, 0
        %v472 = vsel %vm362, %v358, 0
        %v475 = vsel %vm362, %v359, 0
        %v478 = vsel %vm362, %v360, 0
        %v481 = vsel %vm362, %v361, 0
        %483 = vmatpush.msra.mxu0 0.0
        %484 = vmatpush.msra.mxu0 0.0
        %485 = vmatpush.msra.mxu0 0.0
        %486 = vmatpush.msra.mxu0 0.0
        %487 = vmatpush.msra.mxu0 0.0
        %488 = vmatpush.msra.mxu0 0.0
        %489 = vmatpush.msra.mxu0 0.0
        %490 = vmatpush.msra.mxu0 0.0
        %491 = vmatpush.msra.mxu0 0.0
        %492 = vmatpush.msra.mxu0 0.0
        %493 = vmatpush.msra.mxu0 0.0
        %494 = vmatpush.msra.mxu0 0.0
        %495 = vmatpush.msra.mxu0 0.0
        %496 = vmatpush.msra.mxu0 0.0
        %497 = vmatpush.msra.mxu0 %v335
        %498 = vmatpush.msra.mxu0 %v334
        %499 = vmatmul.f32.gmra.mxu0 %v364
        %v500 = vpop.f32.mrf.mxu0
        %v501 = vadd.f32 0.0, %v500
        %502 = vmatmul.f32.gmra.mxu0 %v367
        %v503 = vpop.f32.mrf.mxu0
        %v504 = vadd.f32 0.0, %v503
        %505 = vmatmul.f32.gmra.mxu0 %v370
        %v506 = vpop.f32.mrf.mxu0
        %v507 = vadd.f32 0.0, %v506
        %508 = vmatmul.f32.gmra.mxu0 %v373
        %v509 = vpop.f32.mrf.mxu0
        %v510 = vadd.f32 0.0, %v509
        %511 = vmatmul.f32.gmra.mxu0 %v376
        %v512 = vpop.f32.mrf.mxu0
        %v513 = vadd.f32 0.0, %v512
        %514 = vmatmul.f32.gmra.mxu0 %v379
        %v515 = vpop.f32.mrf.mxu0
        %v516 = vadd.f32 0.0, %v515
        %517 = vmatmul.f32.gmra.mxu0 %v382
        %v518 = vpop.f32.mrf.mxu0
        %v519 = vadd.f32 0.0, %v518
        %520 = vmatmul.f32.gmra.mxu0 %v385
        %v521 = vpop.f32.mrf.mxu0
        %v522 = vadd.f32 0.0, %v521
        %523 = vmatmul.f32.gmra.mxu0 %v388
        %v524 = vpop.f32.mrf.mxu0
        %v525 = vadd.f32 0.0, %v524
        %526 = vmatmul.f32.gmra.mxu0 %v391
        %v527 = vpop.f32.mrf.mxu0
        %v528 = vadd.f32 0.0, %v527
        %529 = vmatmul.f32.gmra.mxu0 %v394
        %v530 = vpop.f32.mrf.mxu0
        %v531 = vadd.f32 0.0, %v530
        %532 = vmatmul.f32.gmra.mxu0 %v397
        %v533 = vpop.f32.mrf.mxu0
        %v534 = vadd.f32 0.0, %v533
        %535 = vmatmul.f32.gmra.mxu0 %v400
        %v536 = vpop.f32.mrf.mxu0
        %v537 = vadd.f32 0.0, %v536
        %538 = vmatmul.f32.gmra.mxu0 %v403
        %v539 = vpop.f32.mrf.mxu0
        %v540 = vadd.f32 0.0, %v539
        %541 = vmatmul.f32.gmra.mxu0 %v406
        %v542 = vpop.f32.mrf.mxu0
        %v543 = vadd.f32 0.0, %v542
        %544 = vmatmul.f32.gmra.mxu0 %v409
        %v545 = vpop.f32.mrf.mxu0
        %v546 = vadd.f32 0.0, %v545
        %547 = vmatmul.f32.gmra.mxu0 %v412
        %v548 = vpop.f32.mrf.mxu0
        %v549 = vadd.f32 0.0, %v548
        %550 = vmatmul.f32.gmra.mxu0 %v415
        %v551 = vpop.f32.mrf.mxu0
        %v552 = vadd.f32 0.0, %v551
        %553 = vmatmul.f32.gmra.mxu0 %v418
        %v554 = vpop.f32.mrf.mxu0
        %v555 = vadd.f32 0.0, %v554
        %556 = vmatmul.f32.gmra.mxu0 %v421
        %v557 = vpop.f32.mrf.mxu0
        %v558 = vadd.f32 0.0, %v557
        %559 = vmatmul.f32.gmra.mxu0 %v424
        %v560 = vpop.f32.mrf.mxu0
        %v561 = vadd.f32 0.0, %v560
        %562 = vmatmul.f32.gmra.mxu0 %v427
        %v563 = vpop.f32.mrf.mxu0
        %v564 = vadd.f32 0.0, %v563
        %565 = vmatmul.f32.gmra.mxu0 %v430
        %v566 = vpop.f32.mrf.mxu0
        %v567 = vadd.f32 0.0, %v566
        %568 = vmatmul.f32.gmra.mxu0 %v433
        %v569 = vpop.f32.mrf.mxu0
        %v570 = vadd.f32 0.0, %v569
        %571 = vmatmul.f32.gmra.mxu0 %v436
        %v572 = vpop.f32.mrf.mxu0
        %v573 = vadd.f32 0.0, %v572
        %574 = vmatmul.f32.gmra.mxu0 %v439
        %v575 = vpop.f32.mrf.mxu0
        %v576 = vadd.f32 0.0, %v575
        %577 = vmatmul.f32.gmra.mxu0 %v442
        %v578 = vpop.f32.mrf.mxu0
        %v579 = vadd.f32 0.0, %v578
        %580 = vmatmul.f32.gmra.mxu0 %v445
        %v581 = vpop.f32.mrf.mxu0
        %v582 = vadd.f32 0.0, %v581
        %583 = vmatmul.f32.gmra.mxu0 %v448
        %v584 = vpop.f32.mrf.mxu0
        %v585 = vadd.f32 0.0, %v584
        %586 = vmatmul.f32.gmra.mxu0 %v451
        %v587 = vpop.f32.mrf.mxu0
        %v588 = vadd.f32 0.0, %v587
        %589 = vmatmul.f32.gmra.mxu0 %v454
        %v590 = vpop.f32.mrf.mxu0
        %v591 = vadd.f32 0.0, %v590
        %592 = vmatmul.f32.gmra.mxu0 %v457
        %v593 = vpop.f32.mrf.mxu0
        %v594 = vadd.f32 0.0, %v593
        %595 = vmatmul.f32.gmra.mxu0 %v460
        %v596 = vpop.f32.mrf.mxu0
        %v597 = vadd.f32 0.0, %v596
        %598 = vmatmul.f32.gmra.mxu0 %v463
        %v599 = vpop.f32.mrf.mxu0
        %v600 = vadd.f32 0.0, %v599
        %601 = vmatmul.f32.gmra.mxu0 %v466
        %v602 = vpop.f32.mrf.mxu0
        %v603 = vadd.f32 0.0, %v602
        %604 = vmatmul.f32.gmra.mxu0 %v469
        %v605 = vpop.f32.mrf.mxu0
        %v606 = vadd.f32 0.0, %v605
        %607 = vmatmul.f32.gmra.mxu0 %v472
        %v608 = vpop.f32.mrf.mxu0
        %v609 = vadd.f32 0.0, %v608
        %610 = vmatmul.f32.gmra.mxu0 %v475
        %v611 = vpop.f32.mrf.mxu0
        %v612 = vadd.f32 0.0, %v611
        %613 = vmatmul.f32.gmra.mxu0 %v478
        %v614 = vpop.f32.mrf.mxu0
        %v615 = vadd.f32 0.0, %v614
        %616 = vmatmul.f32.gmra.mxu0 %v481
        %v617 = vpop.f32.mrf.mxu0
        %v618 = vadd.f32 0.0, %v617
        %619 = vdwg.mxu0
        %v621 = vsel %vm362, %v336, 0
        %v624 = vsel %vm362, %v337, 0
        %626 = vmatpush.msra.mxu0 0.0
        %627 = vmatpush.msra.mxu0 0.0
        %628 = vmatpush.msra.mxu0 0.0
        %629 = vmatpush.msra.mxu0 0.0
        %630 = vmatpush.msra.mxu0 0.0
        %631 = vmatpush.msra.mxu0 0.0
        %632 = vmatpush.msra.mxu0 0.0
        %633 = vmatpush.msra.mxu0 0.0
        %634 = vmatpush.msra.mxu0 0.0
        %635 = vmatpush.msra.mxu0 0.0
        %636 = vmatpush.msra.mxu0 0.0
        %637 = vmatpush.msra.mxu0 0.0
        %638 = vmatpush.msra.mxu0 0.0
        %639 = vmatpush.msra.mxu0 0.0
        %640 = vmatpush.msra.mxu0 %v504
        %641 = vmatpush.msra.mxu0 %v501
        %642 = vmatmul.f32.gmra.mxu0 %v621
        %v643 = vpop.f32.mrf.mxu0
        %v644 = vadd.f32 0.0, %v643
        %645 = vmatmul.f32.gmra.mxu0 %v624
        %v646 = vpop.f32.mrf.mxu0
        %v647 = vadd.f32 0.0, %v646
        %648 = vdwg.mxu0
        %649 = vmatpush.msra.mxu0 0.0
        %650 = vmatpush.msra.mxu0 0.0
        %651 = vmatpush.msra.mxu0 0.0
        %652 = vmatpush.msra.mxu0 0.0
        %653 = vmatpush.msra.mxu0 0.0
        %654 = vmatpush.msra.mxu0 0.0
        %655 = vmatpush.msra.mxu0 0.0
        %656 = vmatpush.msra.mxu0 0.0
        %657 = vmatpush.msra.mxu0 0.0
        %658 = vmatpush.msra.mxu0 0.0
        %659 = vmatpush.msra.mxu0 0.0
        %660 = vmatpush.msra.mxu0 0.0
        %661 = vmatpush.msra.mxu0 0.0
        %662 = vmatpush.msra.mxu0 0.0
        %663 = vmatpush.msra.mxu0 %v510
        %664 = vmatpush.msra.mxu0 %v507
        %665 = vmatmul.f32.gmra.mxu0 %v621
        %v666 = vpop.f32.mrf.mxu0
        %v667 = vadd.f32 0.0, %v666
        %668 = vmatmul.f32.gmra.mxu0 %v624
        %v669 = vpop.f32.mrf.mxu0
        %v670 = vadd.f32 0.0, %v669
        %671 = vdwg.mxu0
        %672 = vmatpush.msra.mxu0 0.0
        %673 = vmatpush.msra.mxu0 0.0
        %674 = vmatpush.msra.mxu0 0.0
        %675 = vmatpush.msra.mxu0 0.0
        %676 = vmatpush.msra.mxu0 0.0
        %677 = vmatpush.msra.mxu0 0.0
        %678 = vmatpush.msra.mxu0 0.0
        %679 = vmatpush.msra.mxu0 0.0
        %680 = vmatpush.msra.mxu0 0.0
        %681 = vmatpush.msra.mxu0 0.0
        %682 = vmatpush.msra.mxu0 0.0
        %683 = vmatpush.msra.mxu0 0.0
        %684 = vmatpush.msra.mxu0 0.0
        %685 = vmatpush.msra.mxu0 0.0
        %686 = vmatpush.msra.mxu0 %v516
        %687 = vmatpush.msra.mxu0 %v513
        %688 = vmatmul.f32.gmra.mxu0 %v621
        %v689 = vpop.f32.mrf.mxu0
        %v690 = vadd.f32 0.0, %v689
        %691 = vmatmul.f32.gmra.mxu0 %v624
        %v692 = vpop.f32.mrf.mxu0
        %v693 = vadd.f32 0.0, %v692
        %694 = vdwg.mxu0
        %695 = vmatpush.msra.mxu0 0.0
        %696 = vmatpush.msra.mxu0 0.0
        %697 = vmatpush.msra.mxu0 0.0
        %698 = vmatpush.msra.mxu0 0.0
        %699 = vmatpush.msra.mxu0 0.0
        %700 = vmatpush.msra.mxu0 0.0
        %701 = vmatpush.msra.mxu0 0.0
        %702 = vmatpush.msra.mxu0 0.0
        %703 = vmatpush.msra.mxu0 0.0
        %704 = vmatpush.msra.mxu0 0.0
        %705 = vmatpush.msra.mxu0 0.0
        %706 = vmatpush.msra.mxu0 0.0
        %707 = vmatpush.msra.mxu0 0.0
        %708 = vmatpush.msra.mxu0 0.0
        %709 = vmatpush.msra.mxu0 %v522
        %710 = vmatpush.msra.mxu0 %v519
        %711 = vmatmul.f32.gmra.mxu0 %v621
        %v712 = vpop.f32.mrf.mxu0
        %v713 = vadd.f32 0.0, %v712
        %714 = vmatmul.f32.gmra.mxu0 %v624
        %v715 = vpop.f32.mrf.mxu0
        %v716 = vadd.f32 0.0, %v715
        %717 = vdwg.mxu0
        %718 = vmatpush.msra.mxu0 0.0
        %719 = vmatpush.msra.mxu0 0.0
        %720 = vmatpush.msra.mxu0 0.0
        %721 = vmatpush.msra.mxu0 0.0
        %722 = vmatpush.msra.mxu0 0.0
        %723 = vmatpush.msra.mxu0 0.0
        %724 = vmatpush.msra.mxu0 0.0
        %725 = vmatpush.msra.mxu0 0.0
        %726 = vmatpush.msra.mxu0 0.0
        %727 = vmatpush.msra.mxu0 0.0
        %728 = vmatpush.msra.mxu0 0.0
        %729 = vmatpush.msra.mxu0 0.0
        %730 = vmatpush.msra.mxu0 0.0
        %731 = vmatpush.msra.mxu0 0.0
        %732 = vmatpush.msra.mxu0 %v528
        %733 = vmatpush.msra.mxu0 %v525
        %734 = vmatmul.f32.gmra.mxu0 %v621
        %v735 = vpop.f32.mrf.mxu0
        %v736 = vadd.f32 0.0, %v735
        %737 = vmatmul.f32.gmra.mxu0 %v624
        %v738 = vpop.f32.mrf.mxu0
        %v739 = vadd.f32 0.0, %v738
        %740 = vdwg.mxu0
        %741 = vmatpush.msra.mxu0 0.0
        %742 = vmatpush.msra.mxu0 0.0
        %743 = vmatpush.msra.mxu0 0.0
        %744 = vmatpush.msra.mxu0 0.0
        %745 = vmatpush.msra.mxu0 0.0
        %746 = vmatpush.msra.mxu0 0.0
        %747 = vmatpush.msra.mxu0 0.0
        %748 = vmatpush.msra.mxu0 0.0
        %749 = vmatpush.msra.mxu0 0.0
        %750 = vmatpush.msra.mxu0 0.0
        %751 = vmatpush.msra.mxu0 0.0
        %752 = vmatpush.msra.mxu0 0.0
        %753 = vmatpush.msra.mxu0 0.0
        %754 = vmatpush.msra.mxu0 0.0
        %755 = vmatpush.msra.mxu0 %v534
        %756 = vmatpush.msra.mxu0 %v531
        %757 = vmatmul.f32.gmra.mxu0 %v621
        %v758 = vpop.f32.mrf.mxu0
        %v759 = vadd.f32 0.0, %v758
        %760 = vmatmul.f32.gmra.mxu0 %v624
        %v761 = vpop.f32.mrf.mxu0
        %v762 = vadd.f32 0.0, %v761
        %763 = vdwg.mxu0
        %764 = vmatpush.msra.mxu0 0.0
        %765 = vmatpush.msra.mxu0 0.0
        %766 = vmatpush.msra.mxu0 0.0
        %767 = vmatpush.msra.mxu0 0.0
        %768 = vmatpush.msra.mxu0 0.0
        %769 = vmatpush.msra.mxu0 0.0
        %770 = vmatpush.msra.mxu0 0.0
        %771 = vmatpush.msra.mxu0 0.0
        %772 = vmatpush.msra.mxu0 0.0
        %773 = vmatpush.msra.mxu0 0.0
        %774 = vmatpush.msra.mxu0 0.0
        %775 = vmatpush.msra.mxu0 0.0
        %776 = vmatpush.msra.mxu0 0.0
        %777 = vmatpush.msra.mxu0 0.0
        %778 = vmatpush.msra.mxu0 %v540
        %779 = vmatpush.msra.mxu0 %v537
        %780 = vmatmul.f32.gmra.mxu0 %v621
        %v781 = vpop.f32.mrf.mxu0
        %v782 = vadd.f32 0.0, %v781
        %783 = vmatmul.f32.gmra.mxu0 %v624
        %v784 = vpop.f32.mrf.mxu0
        %v785 = vadd.f32 0.0, %v784
        %786 = vdwg.mxu0
        %787 = vmatpush.msra.mxu0 0.0
        %788 = vmatpush.msra.mxu0 0.0
        %789 = vmatpush.msra.mxu0 0.0
        %790 = vmatpush.msra.mxu0 0.0
        %791 = vmatpush.msra.mxu0 0.0
        %792 = vmatpush.msra.mxu0 0.0
        %793 = vmatpush.msra.mxu0 0.0
        %794 = vmatpush.msra.mxu0 0.0
        %795 = vmatpush.msra.mxu0 0.0
        %796 = vmatpush.msra.mxu0 0.0
        %797 = vmatpush.msra.mxu0 0.0
        %798 = vmatpush.msra.mxu0 0.0
        %799 = vmatpush.msra.mxu0 0.0
        %800 = vmatpush.msra.mxu0 0.0
        %801 = vmatpush.msra.mxu0 %v546
        %802 = vmatpush.msra.mxu0 %v543
        %803 = vmatmul.f32.gmra.mxu0 %v621
        %v804 = vpop.f32.mrf.mxu0
        %v805 = vadd.f32 0.0, %v804
        %806 = vmatmul.f32.gmra.mxu0 %v624
        %v807 = vpop.f32.mrf.mxu0
        %v808 = vadd.f32 0.0, %v807
        %809 = vdwg.mxu0
        %810 = vmatpush.msra.mxu0 0.0
        %811 = vmatpush.msra.mxu0 0.0
        %812 = vmatpush.msra.mxu0 0.0
        %813 = vmatpush.msra.mxu0 0.0
        %814 = vmatpush.msra.mxu0 0.0
        %815 = vmatpush.msra.mxu0 0.0
        %816 = vmatpush.msra.mxu0 0.0
        %817 = vmatpush.msra.mxu0 0.0
        %818 = vmatpush.msra.mxu0 0.0
        %819 = vmatpush.msra.mxu0 0.0
        %820 = vmatpush.msra.mxu0 0.0
        %821 = vmatpush.msra.mxu0 0.0
        %822 = vmatpush.msra.mxu0 0.0
        %823 = vmatpush.msra.mxu0 0.0
        %824 = vmatpush.msra.mxu0 %v552
        %825 = vmatpush.msra.mxu0 %v549
        %826 = vmatmul.f32.gmra.mxu0 %v621
        %v827 = vpop.f32.mrf.mxu0
        %v828 = vadd.f32 0.0, %v827
        %829 = vmatmul.f32.gmra.mxu0 %v624
        %v830 = vpop.f32.mrf.mxu0
        %v831 = vadd.f32 0.0, %v830
        %832 = vdwg.mxu0
        %833 = vmatpush.msra.mxu0 0.0
        %834 = vmatpush.msra.mxu0 0.0
        %835 = vmatpush.msra.mxu0 0.0
        %836 = vmatpush.msra.mxu0 0.0
        %837 = vmatpush.msra.mxu0 0.0
        %838 = vmatpush.msra.mxu0 0.0
        %839 = vmatpush.msra.mxu0 0.0
        %840 = vmatpush.msra.mxu0 0.0
        %841 = vmatpush.msra.mxu0 0.0
        %842 = vmatpush.msra.mxu0 0.0
        %843 = vmatpush.msra.mxu0 0.0
        %844 = vmatpush.msra.mxu0 0.0
        %845 = vmatpush.msra.mxu0 0.0
        %846 = vmatpush.msra.mxu0 0.0
        %847 = vmatpush.msra.mxu0 %v558
        %848 = vmatpush.msra.mxu0 %v555
        %849 = vmatmul.f32.gmra.mxu0 %v621
        %v850 = vpop.f32.mrf.mxu0
        %v851 = vadd.f32 0.0, %v850
        %852 = vmatmul.f32.gmra.mxu0 %v624
        %v853 = vpop.f32.mrf.mxu0
        %v854 = vadd.f32 0.0, %v853
        %855 = vdwg.mxu0
        %856 = vmatpush.msra.mxu0 0.0
        %857 = vmatpush.msra.mxu0 0.0
        %858 = vmatpush.msra.mxu0 0.0
        %859 = vmatpush.msra.mxu0 0.0
        %860 = vmatpush.msra.mxu0 0.0
        %861 = vmatpush.msra.mxu0 0.0
        %862 = vmatpush.msra.mxu0 0.0
        %863 = vmatpush.msra.mxu0 0.0
        %864 = vmatpush.msra.mxu0 0.0
        %865 = vmatpush.msra.mxu0 0.0
        %866 = vmatpush.msra.mxu0 0.0
        %867 = vmatpush.msra.mxu0 0.0
        %868 = vmatpush.msra.mxu0 0.0
        %869 = vmatpush.msra.mxu0 0.0
        %870 = vmatpush.msra.mxu0 %v564
        %871 = vmatpush.msra.mxu0 %v561
        %872 = vmatmul.f32.gmra.mxu0 %v621
        %v873 = vpop.f32.mrf.mxu0
        %v874 = vadd.f32 0.0, %v873
        %875 = vmatmul.f32.gmra.mxu0 %v624
        %v876 = vpop.f32.mrf.mxu0
        %v877 = vadd.f32 0.0, %v876
        %878 = vdwg.mxu0
        %879 = vmatpush.msra.mxu0 0.0
        %880 = vmatpush.msra.mxu0 0.0
        %881 = vmatpush.msra.mxu0 0.0
        %882 = vmatpush.msra.mxu0 0.0
        %883 = vmatpush.msra.mxu0 0.0
        %884 = vmatpush.msra.mxu0 0.0
        %885 = vmatpush.msra.mxu0 0.0
        %886 = vmatpush.msra.mxu0 0.0
        %887 = vmatpush.msra.mxu0 0.0
        %888 = vmatpush.msra.mxu0 0.0
        %889 = vmatpush.msra.mxu0 0.0
        %890 = vmatpush.msra.mxu0 0.0
        %891 = vmatpush.msra.mxu0 0.0
        %892 = vmatpush.msra.mxu0 0.0
        %893 = vmatpush.msra.mxu0 %v570
        %894 = vmatpush.msra.mxu0 %v567
        %895 = vmatmul.f32.gmra.mxu0 %v621
        %v896 = vpop.f32.mrf.mxu0
        %v897 = vadd.f32 0.0, %v896
        %898 = vmatmul.f32.gmra.mxu0 %v624
        %v899 = vpop.f32.mrf.mxu0
        %v900 = vadd.f32 0.0, %v899
        %901 = vdwg.mxu0
        %902 = vmatpush.msra.mxu0 0.0
        %903 = vmatpush.msra.mxu0 0.0
        %904 = vmatpush.msra.mxu0 0.0
        %905 = vmatpush.msra.mxu0 0.0
        %906 = vmatpush.msra.mxu0 0.0
        %907 = vmatpush.msra.mxu0 0.0
        %908 = vmatpush.msra.mxu0 0.0
        %909 = vmatpush.msra.mxu0 0.0
        %910 = vmatpush.msra.mxu0 0.0
        %911 = vmatpush.msra.mxu0 0.0
        %912 = vmatpush.msra.mxu0 0.0
        %913 = vmatpush.msra.mxu0 0.0
        %914 = vmatpush.msra.mxu0 0.0
        %915 = vmatpush.msra.mxu0 0.0
        %916 = vmatpush.msra.mxu0 %v576
        %917 = vmatpush.msra.mxu0 %v573
        %918 = vmatmul.f32.gmra.mxu0 %v621
        %v919 = vpop.f32.mrf.mxu0
        %v920 = vadd.f32 0.0, %v919
        %921 = vmatmul.f32.gmra.mxu0 %v624
        %v922 = vpop.f32.mrf.mxu0
        %v923 = vadd.f32 0.0, %v922
        %924 = vdwg.mxu0
        %925 = vmatpush.msra.mxu0 0.0
        %926 = vmatpush.msra.mxu0 0.0
        %927 = vmatpush.msra.mxu0 0.0
        %928 = vmatpush.msra.mxu0 0.0
        %929 = vmatpush.msra.mxu0 0.0
        %930 = vmatpush.msra.mxu0 0.0
        %931 = vmatpush.msra.mxu0 0.0
        %932 = vmatpush.msra.mxu0 0.0
        %933 = vmatpush.msra.mxu0 0.0
        %934 = vmatpush.msra.mxu0 0.0
        %935 = vmatpush.msra.mxu0 0.0
        %936 = vmatpush.msra.mxu0 0.0
        %937 = vmatpush.msra.mxu0 0.0
        %938 = vmatpush.msra.mxu0 0.0
        %939 = vmatpush.msra.mxu0 %v582
        %940 = vmatpush.msra.mxu0 %v579
        %941 = vmatmul.f32.gmra.mxu0 %v621
        %v942 = vpop.f32.mrf.mxu0
        %v943 = vadd.f32 0.0, %v942
        %944 = vmatmul.f32.gmra.mxu0 %v624
        %v945 = vpop.f32.mrf.mxu0
        %v946 = vadd.f32 0.0, %v945
        %947 = vdwg.mxu0
        %948 = vmatpush.msra.mxu0 0.0
        %949 = vmatpush.msra.mxu0 0.0
        %950 = vmatpush.msra.mxu0 0.0
        %951 = vmatpush.msra.mxu0 0.0
        %952 = vmatpush.msra.mxu0 0.0
        %953 = vmatpush.msra.mxu0 0.0
        %954 = vmatpush.msra.mxu0 0.0
        %955 = vmatpush.msra.mxu0 0.0
        %956 = vmatpush.msra.mxu0 0.0
        %957 = vmatpush.msra.mxu0 0.0
        %958 = vmatpush.msra.mxu0 0.0
        %959 = vmatpush.msra.mxu0 0.0
        %960 = vmatpush.msra.mxu0 0.0
        %961 = vmatpush.msra.mxu0 0.0
        %962 = vmatpush.msra.mxu0 %v588
        %963 = vmatpush.msra.mxu0 %v585
        %964 = vmatmul.f32.gmra.mxu0 %v621
        %v965 = vpop.f32.mrf.mxu0
        %v966 = vadd.f32 0.0, %v965
        %967 = vmatmul.f32.gmra.mxu0 %v624
        %v968 = vpop.f32.mrf.mxu0
        %v969 = vadd.f32 0.0, %v968
        %970 = vdwg.mxu0
        %971 = vmatpush.msra.mxu0 0.0
        %972 = vmatpush.msra.mxu0 0.0
        %973 = vmatpush.msra.mxu0 0.0
        %974 = vmatpush.msra.mxu0 0.0
        %975 = vmatpush.msra.mxu0 0.0
        %976 = vmatpush.msra.mxu0 0.0
        %977 = vmatpush.msra.mxu0 0.0
        %978 = vmatpush.msra.mxu0 0.0
        %979 = vmatpush.msra.mxu0 0.0
        %980 = vmatpush.msra.mxu0 0.0
        %981 = vmatpush.msra.mxu0 0.0
        %982 = vmatpush.msra.mxu0 0.0
        %983 = vmatpush.msra.mxu0 0.0
        %984 = vmatpush.msra.mxu0 0.0
        %985 = vmatpush.msra.mxu0 %v594
        %986 = vmatpush.msra.mxu0 %v591
        %987 = vmatmul.f32.gmra.mxu0 %v621
        %v988 = vpop.f32.mrf.mxu0
        %v989 = vadd.f32 0.0, %v988
        %990 = vmatmul.f32.gmra.mxu0 %v624
        %v991 = vpop.f32.mrf.mxu0
        %v992 = vadd.f32 0.0, %v991
        %993 = vdwg.mxu0
        %994 = vmatpush.msra.mxu0 0.0
        %995 = vmatpush.msra.mxu0 0.0
        %996 = vmatpush.msra.mxu0 0.0
        %997 = vmatpush.msra.mxu0 0.0
        %998 = vmatpush.msra.mxu0 0.0
        %999 = vmatpush.msra.mxu0 0.0
        %1000 = vmatpush.msra.mxu0 0.0
        %1001 = vmatpush.msra.mxu0 0.0
        %1002 = vmatpush.msra.mxu0 0.0
        %1003 = vmatpush.msra.mxu0 0.0
        %1004 = vmatpush.msra.mxu0 0.0
        %1005 = vmatpush.msra.mxu0 0.0
        %1006 = vmatpush.msra.mxu0 0.0
        %1007 = vmatpush.msra.mxu0 0.0
        %1008 = vmatpush.msra.mxu0 %v600
        %1009 = vmatpush.msra.mxu0 %v597
        %1010 = vmatmul.f32.gmra.mxu0 %v621
        %v1011 = vpop.f32.mrf.mxu0
        %v1012 = vadd.f32 0.0, %v1011
        %1013 = vmatmul.f32.gmra.mxu0 %v624
        %v1014 = vpop.f32.mrf.mxu0
        %v1015 = vadd.f32 0.0, %v1014
        %1016 = vdwg.mxu0
        %1017 = vmatpush.msra.mxu0 0.0
        %1018 = vmatpush.msra.mxu0 0.0
        %1019 = vmatpush.msra.mxu0 0.0
        %1020 = vmatpush.msra.mxu0 0.0
        %1021 = vmatpush.msra.mxu0 0.0
        %1022 = vmatpush.msra.mxu0 0.0
        %1023 = vmatpush.msra.mxu0 0.0
        %1024 = vmatpush.msra.mxu0 0.0
        %1025 = vmatpush.msra.mxu0 0.0
        %1026 = vmatpush.msra.mxu0 0.0
        %1027 = vmatpush.msra.mxu0 0.0
        %1028 = vmatpush.msra.mxu0 0.0
        %1029 = vmatpush.msra.mxu0 0.0
        %1030 = vmatpush.msra.mxu0 0.0
        %1031 = vmatpush.msra.mxu0 %v606
        %1032 = vmatpush.msra.mxu0 %v603
        %1033 = vmatmul.f32.gmra.mxu0 %v621
        %v1034 = vpop.f32.mrf.mxu0
        %v1035 = vadd.f32 0.0, %v1034
        %1036 = vmatmul.f32.gmra.mxu0 %v624
        %v1037 = vpop.f32.mrf.mxu0
        %v1038 = vadd.f32 0.0, %v1037
        %1039 = vdwg.mxu0
        %1040 = vmatpush.msra.mxu0 0.0
        %1041 = vmatpush.msra.mxu0 0.0
        %1042 = vmatpush.msra.mxu0 0.0
        %1043 = vmatpush.msra.mxu0 0.0
        %1044 = vmatpush.msra.mxu0 0.0
        %1045 = vmatpush.msra.mxu0 0.0
        %1046 = vmatpush.msra.mxu0 0.0
        %1047 = vmatpush.msra.mxu0 0.0
        %1048 = vmatpush.msra.mxu0 0.0
        %1049 = vmatpush.msra.mxu0 0.0
        %1050 = vmatpush.msra.mxu0 0.0
        %1051 = vmatpush.msra.mxu0 0.0
        %1052 = vmatpush.msra.mxu0 0.0
        %1053 = vmatpush.msra.mxu0 0.0
        %1054 = vmatpush.msra.mxu0 %v612
        %1055 = vmatpush.msra.mxu0 %v609
        %1056 = vmatmul.f32.gmra.mxu0 %v621
        %v1057 = vpop.f32.mrf.mxu0
        %v1058 = vadd.f32 0.0, %v1057
        %1059 = vmatmul.f32.gmra.mxu0 %v624
        %v1060 = vpop.f32.mrf.mxu0
        %v1061 = vadd.f32 0.0, %v1060
        %1062 = vdwg.mxu0
        %1063 = vmatpush.msra.mxu0 0.0
        %1064 = vmatpush.msra.mxu0 0.0
        %1065 = vmatpush.msra.mxu0 0.0
        %1066 = vmatpush.msra.mxu0 0.0
        %1067 = vmatpush.msra.mxu0 0.0
        %1068 = vmatpush.msra.mxu0 0.0
        %1069 = vmatpush.msra.mxu0 0.0
        %1070 = vmatpush.msra.mxu0 0.0
        %1071 = vmatpush.msra.mxu0 0.0
        %1072 = vmatpush.msra.mxu0 0.0
        %1073 = vmatpush.msra.mxu0 0.0
        %1074 = vmatpush.msra.mxu0 0.0
        %1075 = vmatpush.msra.mxu0 0.0
        %1076 = vmatpush.msra.mxu0 0.0
        %1077 = vmatpush.msra.mxu0 %v618
        %1078 = vmatpush.msra.mxu0 %v615
        %1079 = vmatmul.f32.gmra.mxu0 %v621
        %v1080 = vpop.f32.mrf.mxu0
        %v1081 = vadd.f32 0.0, %v1080
        %1082 = vmatmul.f32.gmra.mxu0 %v624
        %v1083 = vpop.f32.mrf.mxu0
        %v1084 = vadd.f32 0.0, %v1083
        %1085 = vdwg.mxu0
        %v1086 = vmul.f32 %v644, %v644
        %v1087 = vmul.f32 %v647, %v647
        %v1088 = vmul.f32 %v667, %v667
        %v1089 = vmul.f32 %v670, %v670
        %v1090 = vmul.f32 %v690, %v690
        %v1091 = vmul.f32 %v693, %v693
        %v1092 = vmul.f32 %v713, %v713
        %v1093 = vmul.f32 %v716, %v716
        %v1094 = vmul.f32 %v736, %v736
        %v1095 = vmul.f32 %v739, %v739
        %v1096 = vmul.f32 %v759, %v759
        %v1097 = vmul.f32 %v762, %v762
        %v1098 = vmul.f32 %v782, %v782
        %v1099 = vmul.f32 %v785, %v785
        %v1100 = vmul.f32 %v805, %v805
        %v1101 = vmul.f32 %v808, %v808
        %v1102 = vmul.f32 %v644, %v736
        %v1103 = vmul.f32 %v647, %v739
        %v1104 = vmul.f32 %v667, %v759
        %v1105 = vmul.f32 %v670, %v762
        %v1106 = vmul.f32 %v690, %v782
        %v1107 = vmul.f32 %v693, %v785
        %v1108 = vmul.f32 %v713, %v805
        %v1109 = vmul.f32 %v716, %v808
        %v1110 = vsub.f32 %v828, %v1086
        %v1111 = vsub.f32 %v831, %v1087
        %v1112 = vsub.f32 %v851, %v1088
        %v1113 = vsub.f32 %v854, %v1089
        %v1114 = vsub.f32 %v874, %v1090
        %v1115 = vsub.f32 %v877, %v1091
        %v1116 = vsub.f32 %v897, %v1092
        %v1117 = vsub.f32 %v900, %v1093
        %v1118 = vsub.f32 %v920, %v1094
        %v1119 = vsub.f32 %v923, %v1095
        %v1120 = vsub.f32 %v943, %v1096
        %v1121 = vsub.f32 %v946, %v1097
        %v1122 = vsub.f32 %v966, %v1098
        %v1123 = vsub.f32 %v969, %v1099
        %v1124 = vsub.f32 %v989, %v1100
        %v1125 = vsub.f32 %v992, %v1101
        %v1126 = vsub.f32 %v1012, %v1102
        %v1127 = vsub.f32 %v1015, %v1103
        %v1128 = vsub.f32 %v1035, %v1104
        %v1129 = vsub.f32 %v1038, %v1105
        %v1130 = vsub.f32 %v1058, %v1106
        %v1131 = vsub.f32 %v1061, %v1107
        %v1132 = vsub.f32 %v1081, %v1108
        %v1133 = vsub.f32 %v1084, %v1109
        %v1134 = vmul.f32 %v1102, 2.0
        %v1135 = vmul.f32 %v1103, 2.0
        %v1136 = vmul.f32 %v1104, 2.0
        %v1137 = vmul.f32 %v1105, 2.0
        %v1138 = vmul.f32 %v1106, 2.0
        %v1139 = vmul.f32 %v1107, 2.0
        %v1140 = vmul.f32 %v1108, 2.0
        %v1141 = vmul.f32 %v1109, 2.0
        %v1142 = vadd.f32 %v1134, 0.0001
        %v1143 = vadd.f32 %v1135, 0.0001
        %v1144 = vadd.f32 %v1136, 0.0001
        %v1145 = vadd.f32 %v1137, 0.0001
        %v1146 = vadd.f32 %v1138, 0.0001
        %v1147 = vadd.f32 %v1139, 0.0001
        %v1148 = vadd.f32 %v1140, 0.0001
        %v1149 = vadd.f32 %v1141, 0.0001
        %v1150 = vmul.f32 %v1126, 2.0
        %v1151 = vmul.f32 %v1127, 2.0
        %v1152 = vmul.f32 %v1128, 2.0
        %v1153 = vmul.f32 %v1129, 2.0
        %v1154 = vmul.f32 %v1130, 2.0
        %v1155 = vmul.f32 %v1131, 2.0
        %v1156 = vmul.f32 %v1132, 2.0
        %v1157 = vmul.f32 %v1133, 2.0
        %v1158 = vadd.f32 %v1150, 0.0009
        %v1159 = vadd.f32 %v1151, 0.0009
        %v1160 = vadd.f32 %v1152, 0.0009
        %v1161 = vadd.f32 %v1153, 0.0009
        %v1162 = vadd.f32 %v1154, 0.0009
        %v1163 = vadd.f32 %v1155, 0.0009
        %v1164 = vadd.f32 %v1156, 0.0009
        %v1165 = vadd.f32 %v1157, 0.0009
        %v1166 = vmul.f32 %v1142, %v1158
        %v1167 = vmul.f32 %v1143, %v1159
        %v1168 = vmul.f32 %v1144, %v1160
        %v1169 = vmul.f32 %v1145, %v1161
        %v1170 = vmul.f32 %v1146, %v1162
        %v1171 = vmul.f32 %v1147, %v1163
        %v1172 = vmul.f32 %v1148, %v1164
        %v1173 = vmul.f32 %v1149, %v1165
        %v1174 = vadd.f32 %v1086, %v1094
        %v1175 = vadd.f32 %v1087, %v1095
        %v1176 = vadd.f32 %v1088, %v1096
        %v1177 = vadd.f32 %v1089, %v1097
        %v1178 = vadd.f32 %v1090, %v1098
        %v1179 = vadd.f32 %v1091, %v1099
        %v1180 = vadd.f32 %v1092, %v1100
        %v1181 = vadd.f32 %v1093, %v1101
        %v1182 = vadd.f32 %v1174, 0.0001
        %v1183 = vadd.f32 %v1175, 0.0001
        %v1184 = vadd.f32 %v1176, 0.0001
        %v1185 = vadd.f32 %v1177, 0.0001
        %v1186 = vadd.f32 %v1178, 0.0001
        %v1187 = vadd.f32 %v1179, 0.0001
        %v1188 = vadd.f32 %v1180, 0.0001
        %v1189 = vadd.f32 %v1181, 0.0001
        %v1190 = vadd.f32 %v1110, %v1118
        %v1191 = vadd.f32 %v1111, %v1119
        %v1192 = vadd.f32 %v1112, %v1120
        %v1193 = vadd.f32 %v1113, %v1121
        %v1194 = vadd.f32 %v1114, %v1122
        %v1195 = vadd.f32 %v1115, %v1123
        %v1196 = vadd.f32 %v1116, %v1124
        %v1197 = vadd.f32 %v1117, %v1125
        %v1198 = vadd.f32 %v1190, 0.0009
        %v1199 = vadd.f32 %v1191, 0.0009
        %v1200 = vadd.f32 %v1192, 0.0009
        %v1201 = vadd.f32 %v1193, 0.0009
        %v1202 = vadd.f32 %v1194, 0.0009
        %v1203 = vadd.f32 %v1195, 0.0009
        %v1204 = vadd.f32 %v1196, 0.0009
        %v1205 = vadd.f32 %v1197, 0.0009
        %v1206 = vmul.f32 %v1182, %v1198
        %v1207 = vmul.f32 %v1183, %v1199
        %v1208 = vmul.f32 %v1184, %v1200
        %v1209 = vmul.f32 %v1185, %v1201
        %v1210 = vmul.f32 %v1186, %v1202
        %v1211 = vmul.f32 %v1187, %v1203
        %v1212 = vmul.f32 %v1188, %v1204
        %v1213 = vmul.f32 %v1189, %v1205
        %v1214 = vrcp.pop %v1206
        %v1215 = vrcp.pop %v1207
        %v1216 = vrcp.pop %v1208
        %v1217 = vrcp.pop %v1209
        %v1218 = vrcp.pop %v1210
        %v1219 = vrcp.pop %v1211
        %v1220 = vrcp.pop %v1212
        %v1221 = vrcp.pop %v1213
        %v1222 = vmul.f32 %v1206, %v1214
        %v1223 = vmul.f32 %v1207, %v1215
        %v1224 = vmul.f32 %v1208, %v1216
        %v1225 = vmul.f32 %v1209, %v1217
        %v1226 = vmul.f32 %v1210, %v1218
        %v1227 = vmul.f32 %v1211, %v1219
        %v1228 = vmul.f32 %v1212, %v1220
        %v1229 = vmul.f32 %v1213, %v1221
        %v1230 = vsub.f32 2.0, %v1222
        %v1231 = vsub.f32 2.0, %v1223
        %v1232 = vsub.f32 2.0, %v1224
        %v1233 = vsub.f32 2.0, %v1225
        %v1234 = vsub.f32 2.0, %v1226
        %v1235 = vsub.f32 2.0, %v1227
        %v1236 = vsub.f32 2.0, %v1228
        %v1237 = vsub.f32 2.0, %v1229
        %v1238 = vmul.f32 %v1214, %v1230
        %v1239 = vmul.f32 %v1215, %v1231
        %v1240 = vmul.f32 %v1216, %v1232
        %v1241 = vmul.f32 %v1217, %v1233
        %v1242 = vmul.f32 %v1218, %v1234
        %v1243 = vmul.f32 %v1219, %v1235
        %v1244 = vmul.f32 %v1220, %v1236
        %v1245 = vmul.f32 %v1221, %v1237
        %v1246 = vmul.f32 %v1166, %v1238
        %v1247 = vmul.f32 %v1167, %v1239
        %v1248 = vmul.f32 %v1168, %v1240
        %v1249 = vmul.f32 %v1169, %v1241
        %v1250 = vmul.f32 %v1170, %v1242
        %v1251 = vmul.f32 %v1171, %v1243
        %v1252 = vmul.f32 %v1172, %v1244
        %v1253 = vmul.f32 %v1173, %v1245
        %v1254 = vsel %vm362, %v1246, 0.0
        %v1255 = vsel %vm362, %v1247, 0.0
        %v1256 = vadd.f32 %v1254, %v1255
        %v1257 = vsel %vm362, %v1248, 0.0
        %v1258 = vadd.f32 %v1256, %v1257
        %v1259 = vsel %vm362, %v1249, 0.0
        %v1260 = vadd.f32 %v1258, %v1259
        %v1261 = vsel %vm362, %v1250, 0.0
        %v1262 = vadd.f32 %v1260, %v1261
        %v1263 = vsel %vm362, %v1251, 0.0
        %v1264 = vadd.f32 %v1262, %v1263
        %v1265 = vsel %vm362, %v1252, 0.0
        %v1266 = vadd.f32 %v1264, %v1265
        %v1267 = vsel %vm362, %v1253, 0.0
        %v1268 = vadd.f32 %v1266, %v1267
        %v1269 = vrot.slane %v1268, 4
        %v1270 = vadd.f32 %v1268, %v1269
        %v1271 = vrot.slane %v1270, 2
        %v1272 = vadd.f32 %v1270, %v1271
        %v1273 = vrot.slane %v1272, 1
        %v1274 = vadd.f32 %v1272, %v1273
        %vm1275 = vcmask 122880
        %1276 = vst.msk [vmem:[%s315] sm:$0x1] %vm1275, %v1274
        %s1277 = sand.u32 %s145, 1
        %s1278 = scalar_lea.sflag [#allocation4], %s1277
        %s1279 = sand.u32 %s145, 1
        %s1280 = scalar_lea.vmem [#allocation10], %s1279
        // Predicated region
        $region53: #{tpu_custom_call.1} parent=35 // pred_check
          %p1281 = pneg %p155
        $region54: #{tpu_custom_call.1} parent=35 // pred_check_branch
          %1283 = sbr.rel (%p1281) target = $region56
        $region55: #{tpu_custom_call.1} parent=35 // pred_region
          %1285 = vsyncadd %s1278, 0
          %s1286 = sadd.s32 %s30, %s29
          %s1287 = scalar_lea.hbm %s4, %s1286
          %s1289 = sshll.u32 %s1280, 4
          %s1290 = int_to_ptr.vmem [resolvable:$true] %s1289
          %s1291 = sshll.u32 %s1287, 4
          %s1292 = int_to_ptr.hbm [resolvable:$true] %s1291
          %1294 = dma.vmem_to_hbm [thread:$0]  %s1290, 16, %s1292, %s1278
        $region56: #{tpu_custom_call.1} parent=35 // pred_fallthru
          _
      $region36: #{tpu_custom_call.1} parent=5 // pred_fallthru
        _
      %p1295 = scmp.le.s32.totalorder 2, %s20
      // Predicated region
      $region57: #{tpu_custom_call.1} parent=5 // pred_check
        %p1296 = pneg %p1295
      $region58: #{tpu_custom_call.1} parent=5 // pred_check_branch
        %1298 = sbr.rel (%p1296) target = $region60
      $region59: #{tpu_custom_call.1} parent=5 // pred_region
        %s1299 = ssub.s32 %s20, 2
        // Predicated region
        $region61: #{tpu_custom_call.1} parent=59 // pred_check
          %p1300 = pneg %p161
        $region62: #{tpu_custom_call.1} parent=59 // pred_check_branch
          %1302 = sbr.rel (%p1300) target = $region64
        $region63: #{tpu_custom_call.1} parent=59 // pred_region
          %s1303 = sand.u32 %s146, 1
          %s1304 = scalar_lea.sflag [#allocation4], %s1303
          %s1305 = sand.u32 %s146, 1
          %s1306 = scalar_lea.vmem [#allocation10], %s1305
          %1308 = dma.done %s1304, 16
        $region64: #{tpu_custom_call.1} parent=59 // pred_fallthru
          _
      $region60: #{tpu_custom_call.1} parent=5 // pred_fallthru
        _
    $region6: #{tpu_custom_call.1} parent=1 // loop_footer
      %s24 = sadd.s32 1, %s20
    $region7: #{tpu_custom_call.1} parent=1 // loop_footer_branch
      %19 = sbr.rel target = $region3
    $region8: #{tpu_custom_call.1} parent=1 // loop_exit
      _
    %1309 = vsyncpa [#allocation3], 1
    %s1310 = scalar_lea.sflag [#allocation3], 1
    %1311 = vsyncpa %s1310, 1
    %1312 = vsyncpa [#allocation6], 1
    %s1313 = scalar_lea.sflag [#allocation6], 1
    %1314 = vsyncpa %s1313, 1
    %1315 = vsyncpa [#allocation9], 1
    %1316 = vsyncpa [#allocation4], 1
    %s1317 = scalar_lea.sflag [#allocation4], 1
    %1318 = vsyncpa %s1317, 1

</llo_original>
